<compile_context>
chip_gen: v5e
topology: v5e:2x2
jax: 0.10.0
libtpu: 0.0.40
codegen_flags: <defaults>
</compile_context>

<pallas_src>
import functools

import jax
import jax.numpy as jnp
from jax.experimental import pallas as pl
from jax.experimental.pallas import tpu as pltpu

# --- small synthetic config (consistent with the module's constructor semantics) ---
B, H, W = 2, 16, 16       # batch, spatial size of the feature map fed to the stand-in backbone
CIN = 8                   # input channels
FEATURES_DIM = 128        # features_dim (stand-in for CHANNELS_NUM_IN_LAST_CONV[backbone])
FC_OUT = 64               # fc_output_dim
GEM_P = 3.0               # GeM p (nn.Parameter initialized to 3)
GEM_EPS = 1e-6            # GeM eps
L2_EPS = 1e-12            # F.normalize default eps

LANE = 128                # TPU lane width


def _round_up(x, m):
    return ((x + m - 1) // m) * m


def geo_kernel(x_ref, wbb_ref, bbb_ref, wfc_ref, bfc_ref, o_ref, *,
               b, hw, p, gem_eps, l2_eps):
    """Single invocation: all B batch elements at once (whole problem in VMEM).

    x_ref:   [B*H*W, CIN]          (lane axis = channels, NOT zero-padded)
    wbb_ref: [CIN, FEATURES_DIM]
    bbb_ref: [1, FEATURES_DIM]
    wfc_ref: [FEATURES_DIM, FC_PAD]
    bfc_ref: [1, FC_PAD]
    o_ref:   [B, FC_PAD]           (padded columns are zero; sliced in wrapper)
    """
    x = x_ref[...]                                                   # [B*HW, CIN]

    # --- stand-in backbone: pointwise conv (1x1) + ReLU, as an MXU matmul ---
    # TODO(synk): the full pretrained torchvision backbone (ResNet/VGG/...) is not re-implemented.
    feats = jnp.dot(x, wbb_ref[...], preferred_element_type=jnp.float32) + bbb_ref[...]
    feats = jnp.maximum(feats, 0.0)                                  # [B*HW, C]

    # --- L2Norm over channels (lane axis); rsqrt form: x / max(||x||, eps) ---
    sumsq = jnp.sum(feats * feats, axis=-1, keepdims=True)
    feats = feats * jax.lax.rsqrt(jnp.maximum(sumsq, l2_eps * l2_eps))

    # --- GeM pooling: clamp, explicit cube (p=3, VALU only), per-batch spatial mean ---
    c = jnp.maximum(feats, gem_eps)
    c3 = c * c * c                                                   # [B*HW, C]
    # Per-batch mean over HW as a sublane reduction (XLU); O(B*HW*C), no MXU/selector.
    pooled = jnp.mean(c3.reshape(b, hw, -1), axis=1)                 # [B, C]
    pooled = pooled ** (1.0 / p)                                     # tiny tile, EUP is fine

    # --- Linear(features_dim, fc_output_dim) (lane-padded to FC_PAD) ---
    y = jnp.dot(pooled, wfc_ref[...], preferred_element_type=jnp.float32) + bfc_ref[...]  # [B, FC_PAD]

    # --- final L2Norm (dim=1); padded columns are 0 so they do not affect the norm ---
    sumsq2 = jnp.sum(y * y, axis=-1, keepdims=True)
    o_ref[...] = y * jax.lax.rsqrt(jnp.maximum(sumsq2, l2_eps * l2_eps))


@jax.jit
def geolocalization_forward(x_nchw, padded_params):
    """Jitted wrapper: NCHW -> lane-dense [B*H*W, CIN]; one whole-array Pallas call."""
    wbb, bbb, wfc_p, bfc_p = padded_params
    b, cin, h, w = x_nchw.shape
    hw = h * w
    fc_pad = wfc_p.shape[1]
    features_dim = wbb.shape[1]

    # layout: NCHW -> [B*H*W, CIN] (channels last / lane axis).  No K-padding: the MXU
    # pass count is identical and the DMA traffic drops 16x vs. padding CIN to 128.
    x = jnp.transpose(x_nchw, (0, 2, 3, 1)).reshape(b * hw, cin)

    kernel = functools.partial(geo_kernel, b=b, hw=hw,
                               p=GEM_P, gem_eps=GEM_EPS, l2_eps=L2_EPS)

    flops = (2 * b * hw * cin * features_dim          # backbone matmul
             + 10 * b * hw * features_dim             # relu + norm + clamp + cube (VALU)
             + 2 * b * features_dim * fc_pad)         # FC matmul
    transcendentals = b * hw + b + 3 * b * features_dim
    bytes_accessed = 4 * (x.size + wbb.size + bbb.size + wfc_p.size + bfc_p.size + b * fc_pad)

    # Single invocation (no grid): whole problem (<0.1 MB) lives in VMEM; memory-space
    # BlockSpecs map the full arrays in, avoiding any per-step grid bookkeeping.
    out = pl.pallas_call(
        kernel,
        out_shape=jax.ShapeDtypeStruct((b, fc_pad), jnp.float32),
        in_specs=[
            pl.BlockSpec(memory_space=pltpu.MemorySpace.VMEM),   # x slab [B*HW, CIN]
            pl.BlockSpec(memory_space=pltpu.MemorySpace.VMEM),   # backbone stand-in weight
            pl.BlockSpec(memory_space=pltpu.MemorySpace.VMEM),   # backbone stand-in bias
            pl.BlockSpec(memory_space=pltpu.MemorySpace.VMEM),   # fc weight (lane-padded)
            pl.BlockSpec(memory_space=pltpu.MemorySpace.VMEM),   # fc bias (lane-padded)
        ],
        out_specs=pl.BlockSpec(memory_space=pltpu.MemorySpace.VMEM),
        cost_estimate=pl.CostEstimate(flops=flops,
                                      transcendentals=transcendentals,
                                      bytes_accessed=bytes_accessed),
    )(x, wbb, bbb, wfc_p, bfc_p)
    return out[:, :FC_OUT]


def reference_forward(x_nchw, params):
    """Pure-JAX reference of the same forward semantics (for validation)."""
    wbb, bbb, wfc, bfc = params
    b, cin, h, w = x_nchw.shape
    x = jnp.transpose(x_nchw, (0, 2, 3, 1)).reshape(b, h * w, cin)
    feats = jnp.maximum(jnp.einsum("bsc,cf->bsf", x, wbb) + bbb[None], 0.0)
    feats = feats / jnp.maximum(jnp.linalg.norm(feats, axis=-1, keepdims=True), L2_EPS)
    pooled = jnp.mean(jnp.maximum(feats, GEM_EPS) ** GEM_P, axis=1) ** (1.0 / GEM_P)
    y = pooled @ wfc + bfc
    return y / jnp.maximum(jnp.linalg.norm(y, axis=-1, keepdims=True), L2_EPS)


def init_params(key):
    k1, k2, k3, k4 = jax.random.split(key, 4)
    wbb = 0.1 * jax.random.normal(k1, (CIN, FEATURES_DIM), jnp.float32)
    bbb = 0.1 * jax.random.normal(k2, (1, FEATURES_DIM), jnp.float32)
    wfc = 0.1 * jax.random.normal(k3, (FEATURES_DIM, FC_OUT), jnp.float32)
    bfc = 0.1 * jax.random.normal(k4, (1, FC_OUT), jnp.float32)
    return wbb, bbb, wfc, bfc


def pad_params_for_kernel(params):
    """One-time lane-padding of the FC weight/bias (hoisted out of the hot path)."""
    wbb, bbb, wfc, bfc = params
    fc_pad = _round_up(wfc.shape[1], LANE)
    wfc_p = jnp.pad(wfc, ((0, 0), (0, fc_pad - wfc.shape[1])))   # zero cols -> zero outputs
    bfc_p = jnp.pad(bfc, ((0, 0), (0, fc_pad - bfc.shape[1])))
    return wbb, bbb, wfc_p, bfc_p


if __name__ == "__main__":
    key = jax.random.PRNGKey(0)
    kx, kp = jax.random.split(key)
    x = jax.random.normal(kx, (B, CIN, H, W), jnp.float32)
    params = init_params(kp)
    kparams = pad_params_for_kernel(params)   # pad once, outside the jitted hot path

    out = jax.block_until_ready(geolocalization_forward(x, kparams))

    ref = jax.block_until_ready(reference_forward(x, params))
    assert out.shape == (B, FC_OUT), out.shape
    assert jnp.allclose(out, ref, atol=1e-5, rtol=1e-5), float(jnp.max(jnp.abs(out - ref)))

    print("KERNEL_OK")
</pallas_src>

<mosaic_0001>
module attributes {stable_mosaic.version = 11 : i64} {
  func.func @geo_kernel(%arg0: memref<512x8xf32, #tpu.memory_space<vmem>>, %arg1: memref<8x128xf32, #tpu.memory_space<vmem>>, %arg2: memref<1x128xf32, #tpu.memory_space<vmem>>, %arg3: memref<128x128xf32, #tpu.memory_space<vmem>>, %arg4: memref<1x128xf32, #tpu.memory_space<vmem>>, %arg5: memref<2x128xf32, #tpu.memory_space<vmem>>) attributes {dimension_semantics = [], scalar_prefetch = 0 : i64, scratch_operands = 0 : i64, tpu.core_type = #tpu.core_type<tc>} {
    %c0 = arith.constant 0 : index
    %c0_0 = arith.constant 0 : index
    %0 = vector.load %arg0[%c0, %c0_0] : memref<512x8xf32, #tpu.memory_space<vmem>>, vector<512x8xf32>
    %c0_1 = arith.constant 0 : index
    %c0_2 = arith.constant 0 : index
    %1 = vector.load %arg1[%c0_1, %c0_2] : memref<8x128xf32, #tpu.memory_space<vmem>>, vector<8x128xf32>
    %cst = arith.constant dense<0.000000e+00> : vector<512x128xf32>
    %2 = tpu.matmul %0, %1, %cst {dimension_numbers = #tpu.dot_dimension_numbers<[1], [0], [0], [1], [0, 0, 1, 1], [], []>} : vector<512x8xf32>, vector<8x128xf32>, vector<512x128xf32> -> vector<512x128xf32>
    %c0_3 = arith.constant 0 : index
    %c0_4 = arith.constant 0 : index
    %3 = vector.load %arg2[%c0_3, %c0_4] : memref<1x128xf32, #tpu.memory_space<vmem>>, vector<1x128xf32>
    %4 = vector.broadcast %3 : vector<1x128xf32> to vector<512x128xf32>
    %5 = arith.addf %2, %4 : vector<512x128xf32>
    %cst_5 = arith.constant 0.000000e+00 : f32
    %6 = vector.broadcast %cst_5 : f32 to vector<512x128xf32>
    %7 = arith.maximumf %5, %6 : vector<512x128xf32>
    %8 = arith.mulf %7, %7 : vector<512x128xf32>
    %cst_6 = arith.constant dense<0.000000e+00> : vector<512xf32>
    %9 = vector.multi_reduction <add>, %8, %cst_6 [1] : vector<512x128xf32> to vector<512xf32>
    %10 = vector.shape_cast %9 : vector<512xf32> to vector<512x1xf32>
    %cst_7 = arith.constant 1.000000e-24 : f32
    %11 = vector.broadcast %cst_7 : f32 to vector<512x1xf32>
    %12 = arith.maximumf %10, %11 : vector<512x1xf32>
    %13 = math.rsqrt %12 : vector<512x1xf32>
    %14 = vector.broadcast %13 : vector<512x1xf32> to vector<512x128xf32>
    %15 = arith.mulf %7, %14 : vector<512x128xf32>
    %cst_8 = arith.constant 9.99999997E-7 : f32
    %16 = vector.broadcast %cst_8 : f32 to vector<512x128xf32>
    %17 = arith.maximumf %15, %16 : vector<512x128xf32>
    %18 = arith.mulf %17, %17 : vector<512x128xf32>
    %19 = arith.mulf %18, %17 : vector<512x128xf32>
    %20 = vector.shape_cast %19 : vector<512x128xf32> to vector<2x256x128xf32>
    %cst_9 = arith.constant dense<0.000000e+00> : vector<2x128xf32>
    %21 = vector.multi_reduction <add>, %20, %cst_9 [1] : vector<2x256x128xf32> to vector<2x128xf32>
    %cst_10 = arith.constant 2.560000e+02 : f32
    %22 = vector.broadcast %cst_10 : f32 to vector<2x128xf32>
    %23 = arith.divf %21, %22 : vector<2x128xf32>
    %cst_11 = arith.constant 0.333333343 : f32
    %24 = vector.broadcast %cst_11 : f32 to vector<2x128xf32>
    %25 = math.powf %23, %24 : vector<2x128xf32>
    %c0_12 = arith.constant 0 : index
    %c0_13 = arith.constant 0 : index
    %26 = vector.load %arg3[%c0_12, %c0_13] : memref<128x128xf32, #tpu.memory_space<vmem>>, vector<128x128xf32>
    %cst_14 = arith.constant dense<0.000000e+00> : vector<2x128xf32>
    %27 = tpu.matmul %25, %26, %cst_14 {dimension_numbers = #tpu.dot_dimension_numbers<[1], [0], [0], [1], [0, 0, 1, 1], [], []>} : vector<2x128xf32>, vector<128x128xf32>, vector<2x128xf32> -> vector<2x128xf32>
    %c0_15 = arith.constant 0 : index
    %c0_16 = arith.constant 0 : index
    %28 = vector.load %arg4[%c0_15, %c0_16] : memref<1x128xf32, #tpu.memory_space<vmem>>, vector<1x128xf32>
    %29 = vector.broadcast %28 : vector<1x128xf32> to vector<2x128xf32>
    %30 = arith.addf %27, %29 : vector<2x128xf32>
    %31 = arith.mulf %30, %30 : vector<2x128xf32>
    %cst_17 = arith.constant dense<0.000000e+00> : vector<2xf32>
    %32 = vector.multi_reduction <add>, %31, %cst_17 [1] : vector<2x128xf32> to vector<2xf32>
    %33 = vector.shape_cast %32 : vector<2xf32> to vector<2x1xf32>
    %cst_18 = arith.constant 1.000000e-24 : f32
    %34 = vector.broadcast %cst_18 : f32 to vector<2x1xf32>
    %35 = arith.maximumf %33, %34 : vector<2x1xf32>
    %36 = math.rsqrt %35 : vector<2x1xf32>
    %37 = vector.broadcast %36 : vector<2x1xf32> to vector<2x128xf32>
    %38 = arith.mulf %30, %37 : vector<2x128xf32>
    %c0_19 = arith.constant 0 : index
    %c0_20 = arith.constant 0 : index
    %39 = vector.load %arg5[%c0_19, %c0_20] : memref<2x128xf32, #tpu.memory_space<vmem>>, vector<2x128xf32>
    tpu.vector_store %arg5[%c0_19, %c0_20], %38 {strides = array<i32>} : memref<2x128xf32, #tpu.memory_space<vmem>>, vector<2x128xf32>,
    return
  }
}

</mosaic_0001>

<llo_original>
// kernel: geolocalization_forward.1
$region0: #{geolocalization_forward.1}
  #allocation0 [shape = 'u32[]', space=smem, size = 0x4, offset = 0x4, fixed_abs, tag = 'smem constant byte address 0x4 - core index']
  #allocation1 [shape = 'u32[72,128]{1,0:T(1,128)}', space=vmem, size = 0x9000, scoped, tag = 'internal scratch']
  %s0 = inlined_call_operand.vmem [shape: f32[512,8], index: 0, kind: input, shape index: {}]
  %s1 = inlined_call_operand.vmem [shape: f32[8,128], index: 1, kind: input, shape index: {}]
  %s2 = inlined_call_operand.vmem [shape: f32[1,128], index: 2, kind: input, shape index: {}]
  %s3 = inlined_call_operand.vmem [shape: f32[128,128], index: 3, kind: input, shape index: {}]
  %s4 = inlined_call_operand.vmem [shape: f32[1,128], index: 4, kind: input, shape index: {}]
  %s5 = inlined_call_operand.hbm [shape: f32[2,128], index: 5, kind: output, shape index: {}]
  %s6 = sld [smem:[#allocation0]]
  $region30: #{geolocalization_forward.1} parent=0
    _
  %s8 = ssub.s32 1, %s6
  %s9 = scalar_select 0, %s8, %s6
  $region1: #{geolocalization_forward.1} parent=0
    #allocation2 [shape = 'u8[1024]{0}', space=vmem, size = 0x400, scoped, tag = 'output window, operand 0, single buffered']
    #allocation3 [shape = 's32[1]{0}', space=sflag, size = 0x4, scoped, tag = 'scoped memory for geolocalization_forward.1']
    %10 = vsyncpa [#allocation3], 0
    // Predicated region
    $region2: #{geolocalization_forward.1} parent=1 // pred_check
      _
    $region3: #{geolocalization_forward.1} parent=1 // pred_check_branch
      %12 = sbr.rel (0) target = $region5
    $region4: #{geolocalization_forward.1} parent=1 // pred_region
      _
    $region5: #{geolocalization_forward.1} parent=1 // pred_fallthru
      _
    // Predicated region
    $region6: #{geolocalization_forward.1} parent=1 // pred_check
      _
    $region7: #{geolocalization_forward.1} parent=1 // pred_check_branch
      %14 = sbr.rel (0) target = $region9
    $region8: #{geolocalization_forward.1} parent=1 // pred_region
      _
    $region9: #{geolocalization_forward.1} parent=1 // pred_fallthru
      _
    // Predicated region
    $region10: #{geolocalization_forward.1} parent=1 // pred_check
      _
    $region11: #{geolocalization_forward.1} parent=1 // pred_check_branch
      %16 = sbr.rel (0) target = $region13
    $region12: #{geolocalization_forward.1} parent=1 // pred_region
      _
    $region13: #{geolocalization_forward.1} parent=1 // pred_fallthru
      _
    // Predicated region
    $region14: #{geolocalization_forward.1} parent=1 // pred_check
      _
    $region15: #{geolocalization_forward.1} parent=1 // pred_check_branch
      %18 = sbr.rel (0) target = $region17
    $region16: #{geolocalization_forward.1} parent=1 // pred_region
      _
    $region17: #{geolocalization_forward.1} parent=1 // pred_fallthru
      _
    // Predicated region
    $region18: #{geolocalization_forward.1} parent=1 // pred_check
      _
    $region19: #{geolocalization_forward.1} parent=1 // pred_check_branch
      %20 = sbr.rel (0) target = $region21
    $region20: #{geolocalization_forward.1} parent=1 // pred_region
      _
    $region21: #{geolocalization_forward.1} parent=1 // pred_fallthru
      _
    %v21 = vld [vmem:[%s0] sm:$0xff]
    %v22 = vld [vmem:[%s0 + $0x8] sm:$0xff]
    %v23 = vld [vmem:[%s0 + $0x10] sm:$0xff]
    %v24 = vld [vmem:[%s0 + $0x18] sm:$0xff]
    %v25 = vld [vmem:[%s0 + $0x20] sm:$0xff]
    %v26 = vld [vmem:[%s0 + $0x28] sm:$0xff]
    %v27 = vld [vmem:[%s0 + $0x30] sm:$0xff]
    %v28 = vld [vmem:[%s0 + $0x38] sm:$0xff]
    %v29 = vld [vmem:[%s0 + $0x40] sm:$0xff]
    %v30 = vld [vmem:[%s0 + $0x48] sm:$0xff]
    %v31 = vld [vmem:[%s0 + $0x50] sm:$0xff]
    %v32 = vld [vmem:[%s0 + $0x58] sm:$0xff]
    %v33 = vld [vmem:[%s0 + $0x60] sm:$0xff]
    %v34 = vld [vmem:[%s0 + $0x68] sm:$0xff]
    %v35 = vld [vmem:[%s0 + $0x70] sm:$0xff]
    %v36 = vld [vmem:[%s0 + $0x78] sm:$0xff]
    %v37 = vld [vmem:[%s0 + $0x80] sm:$0xff]
    %v38 = vld [vmem:[%s0 + $0x88] sm:$0xff]
    %v39 = vld [vmem:[%s0 + $0x90] sm:$0xff]
    %v40 = vld [vmem:[%s0 + $0x98] sm:$0xff]
    %v41 = vld [vmem:[%s0 + $0xa0] sm:$0xff]
    %v42 = vld [vmem:[%s0 + $0xa8] sm:$0xff]
    %v43 = vld [vmem:[%s0 + $0xb0] sm:$0xff]
    %v44 = vld [vmem:[%s0 + $0xb8] sm:$0xff]
    %v45 = vld [vmem:[%s0 + $0xc0] sm:$0xff]
    %v46 = vld [vmem:[%s0 + $0xc8] sm:$0xff]
    %v47 = vld [vmem:[%s0 + $0xd0] sm:$0xff]
    %v48 = vld [vmem:[%s0 + $0xd8] sm:$0xff]
    %v49 = vld [vmem:[%s0 + $0xe0] sm:$0xff]
    %v50 = vld [vmem:[%s0 + $0xe8] sm:$0xff]
    %v51 = vld [vmem:[%s0 + $0xf0] sm:$0xff]
    %v52 = vld [vmem:[%s0 + $0xf8] sm:$0xff]
    %v53 = vld [vmem:[%s0 + $0x100] sm:$0xff]
    %v54 = vld [vmem:[%s0 + $0x108] sm:$0xff]
    %v55 = vld [vmem:[%s0 + $0x110] sm:$0xff]
    %v56 = vld [vmem:[%s0 + $0x118] sm:$0xff]
    %v57 = vld [vmem:[%s0 + $0x120] sm:$0xff]
    %v58 = vld [vmem:[%s0 + $0x128] sm:$0xff]
    %v59 = vld [vmem:[%s0 + $0x130] sm:$0xff]
    %v60 = vld [vmem:[%s0 + $0x138] sm:$0xff]
    %v61 = vld [vmem:[%s0 + $0x140] sm:$0xff]
    %v62 = vld [vmem:[%s0 + $0x148] sm:$0xff]
    %v63 = vld [vmem:[%s0 + $0x150] sm:$0xff]
    %v64 = vld [vmem:[%s0 + $0x158] sm:$0xff]
    %v65 = vld [vmem:[%s0 + $0x160] sm:$0xff]
    %v66 = vld [vmem:[%s0 + $0x168] sm:$0xff]
    %v67 = vld [vmem:[%s0 + $0x170] sm:$0xff]
    %v68 = vld [vmem:[%s0 + $0x178] sm:$0xff]
    %v69 = vld [vmem:[%s0 + $0x180] sm:$0xff]
    %v70 = vld [vmem:[%s0 + $0x188] sm:$0xff]
    %v71 = vld [vmem:[%s0 + $0x190] sm:$0xff]
    %v72 = vld [vmem:[%s0 + $0x198] sm:$0xff]
    %v73 = vld [vmem:[%s0 + $0x1a0] sm:$0xff]
    %v74 = vld [vmem:[%s0 + $0x1a8] sm:$0xff]
    %v75 = vld [vmem:[%s0 + $0x1b0] sm:$0xff]
    %v76 = vld [vmem:[%s0 + $0x1b8] sm:$0xff]
    %v77 = vld [vmem:[%s0 + $0x1c0] sm:$0xff]
    %v78 = vld [vmem:[%s0 + $0x1c8] sm:$0xff]
    %v79 = vld [vmem:[%s0 + $0x1d0] sm:$0xff]
    %v80 = vld [vmem:[%s0 + $0x1d8] sm:$0xff]
    %v81 = vld [vmem:[%s0 + $0x1e0] sm:$0xff]
    %v82 = vld [vmem:[%s0 + $0x1e8] sm:$0xff]
    %v83 = vld [vmem:[%s0 + $0x1f0] sm:$0xff]
    %v84 = vld [vmem:[%s0 + $0x1f8] sm:$0xff]
    %v85 = vld [vmem:[%s1] sm:$0xff]
    %v86 = vld [vmem:[%s2] sm:$0x1]
    %v88 = vperm.slane %v86, 0
    %vm90 = vcmask 64512
    %v92 = vsel %vm90, %v21, 0
    %v95 = vsel %vm90, %v22, 0
    %v98 = vsel %vm90, %v23, 0
    %v101 = vsel %vm90, %v24, 0
    %v104 = vsel %vm90, %v25, 0
    %v107 = vsel %vm90, %v26, 0
    %v110 = vsel %vm90, %v27, 0
    %v113 = vsel %vm90, %v28, 0
    %v116 = vsel %vm90, %v29, 0
    %v119 = vsel %vm90, %v30, 0
    %v122 = vsel %vm90, %v31, 0
    %v125 = vsel %vm90, %v32, 0
    %v128 = vsel %vm90, %v33, 0
    %v131 = vsel %vm90, %v34, 0
    %v134 = vsel %vm90, %v35, 0
    %v137 = vsel %vm90, %v36, 0
    %v140 = vsel %vm90, %v37, 0
    %v143 = vsel %vm90, %v38, 0
    %v146 = vsel %vm90, %v39, 0
    %v149 = vsel %vm90, %v40, 0
    %v152 = vsel %vm90, %v41, 0
    %v155 = vsel %vm90, %v42, 0
    %v158 = vsel %vm90, %v43, 0
    %v161 = vsel %vm90, %v44, 0
    %v164 = vsel %vm90, %v45, 0
    %v167 = vsel %vm90, %v46, 0
    %v170 = vsel %vm90, %v47, 0
    %v173 = vsel %vm90, %v48, 0
    %v176 = vsel %vm90, %v49, 0
    %v179 = vsel %vm90, %v50, 0
    %v182 = vsel %vm90, %v51, 0
    %v185 = vsel %vm90, %v52, 0
    %v188 = vsel %vm90, %v53, 0
    %v191 = vsel %vm90, %v54, 0
    %v194 = vsel %vm90, %v55, 0
    %v197 = vsel %vm90, %v56, 0
    %v200 = vsel %vm90, %v57, 0
    %v203 = vsel %vm90, %v58, 0
    %v206 = vsel %vm90, %v59, 0
    %v209 = vsel %vm90, %v60, 0
    %v212 = vsel %vm90, %v61, 0
    %v215 = vsel %vm90, %v62, 0
    %v218 = vsel %vm90, %v63, 0
    %v221 = vsel %vm90, %v64, 0
    %v224 = vsel %vm90, %v65, 0
    %v227 = vsel %vm90, %v66, 0
    %v230 = vsel %vm90, %v67, 0
    %v233 = vsel %vm90, %v68, 0
    %v236 = vsel %vm90, %v69, 0
    %v239 = vsel %vm90, %v70, 0
    %v242 = vsel %vm90, %v71, 0
    %v245 = vsel %vm90, %v72, 0
    %v248 = vsel %vm90, %v73, 0
    %v251 = vsel %vm90, %v74, 0
    %v254 = vsel %vm90, %v75, 0
    %v257 = vsel %vm90, %v76, 0
    %v260 = vsel %vm90, %v77, 0
    %v263 = vsel %vm90, %v78, 0
    %v266 = vsel %vm90, %v79, 0
    %v269 = vsel %vm90, %v80, 0
    %v272 = vsel %vm90, %v81, 0
    %v275 = vsel %vm90, %v82, 0
    %v278 = vsel %vm90, %v83, 0
    %v281 = vsel %vm90, %v84, 0
    %283 = vmatpush.msra.mxu0 0.0
    %284 = vmatpush.msra.mxu0 0.0
    %285 = vmatpush.msra.mxu0 0.0
    %286 = vmatpush.msra.mxu0 0.0
    %287 = vmatpush.msra.mxu0 0.0
    %288 = vmatpush.msra.mxu0 0.0
    %289 = vmatpush.msra.mxu0 0.0
    %290 = vmatpush.msra.mxu0 0.0
    %291 = vmatpush.msra.mxu0 0.0
    %292 = vmatpush.msra.mxu0 0.0
    %293 = vmatpush.msra.mxu0 0.0
    %294 = vmatpush.msra.mxu0 0.0
    %295 = vmatpush.msra.mxu0 0.0
    %296 = vmatpush.msra.mxu0 0.0
    %297 = vmatpush.msra.mxu0 0.0
    %298 = vmatpush.msra.mxu0 %v85
    %299 = vmatmul.f32.gmra.mxu0 %v92
    %v300 = vpop.f32.mrf.mxu0
    %v301 = vadd.f32 %v88, %v300
    %302 = vmatmul.f32.gmra.mxu0 %v95
    %v303 = vpop.f32.mrf.mxu0
    %v304 = vadd.f32 %v88, %v303
    %305 = vmatmul.f32.gmra.mxu0 %v98
    %v306 = vpop.f32.mrf.mxu0
    %v307 = vadd.f32 %v88, %v306
    %308 = vmatmul.f32.gmra.mxu0 %v101
    %v309 = vpop.f32.mrf.mxu0
    %v310 = vadd.f32 %v88, %v309
    %311 = vmatmul.f32.gmra.mxu0 %v104
    %v312 = vpop.f32.mrf.mxu0
    %v313 = vadd.f32 %v88, %v312
    %314 = vmatmul.f32.gmra.mxu0 %v107
    %v315 = vpop.f32.mrf.mxu0
    %v316 = vadd.f32 %v88, %v315
    %317 = vmatmul.f32.gmra.mxu0 %v110
    %v318 = vpop.f32.mrf.mxu0
    %v319 = vadd.f32 %v88, %v318
    %320 = vmatmul.f32.gmra.mxu0 %v113
    %v321 = vpop.f32.mrf.mxu0
    %v322 = vadd.f32 %v88, %v321
    %323 = vmatmul.f32.gmra.mxu0 %v116
    %v324 = vpop.f32.mrf.mxu0
    %v325 = vadd.f32 %v88, %v324
    %326 = vmatmul.f32.gmra.mxu0 %v119
    %v327 = vpop.f32.mrf.mxu0
    %v328 = vadd.f32 %v88, %v327
    %329 = vmatmul.f32.gmra.mxu0 %v122
    %v330 = vpop.f32.mrf.mxu0
    %v331 = vadd.f32 %v88, %v330
    %332 = vmatmul.f32.gmra.mxu0 %v125
    %v333 = vpop.f32.mrf.mxu0
    %v334 = vadd.f32 %v88, %v333
    %335 = vmatmul.f32.gmra.mxu0 %v128
    %v336 = vpop.f32.mrf.mxu0
    %v337 = vadd.f32 %v88, %v336
    %338 = vmatmul.f32.gmra.mxu0 %v131
    %v339 = vpop.f32.mrf.mxu0
    %v340 = vadd.f32 %v88, %v339
    %341 = vmatmul.f32.gmra.mxu0 %v134
    %v342 = vpop.f32.mrf.mxu0
    %v343 = vadd.f32 %v88, %v342
    %344 = vmatmul.f32.gmra.mxu0 %v137
    %v345 = vpop.f32.mrf.mxu0
    %v346 = vadd.f32 %v88, %v345
    %347 = vmatmul.f32.gmra.mxu0 %v140
    %v348 = vpop.f32.mrf.mxu0
    %v349 = vadd.f32 %v88, %v348
    %350 = vmatmul.f32.gmra.mxu0 %v143
    %v351 = vpop.f32.mrf.mxu0
    %v352 = vadd.f32 %v88, %v351
    %353 = vmatmul.f32.gmra.mxu0 %v146
    %v354 = vpop.f32.mrf.mxu0
    %v355 = vadd.f32 %v88, %v354
    %356 = vmatmul.f32.gmra.mxu0 %v149
    %v357 = vpop.f32.mrf.mxu0
    %v358 = vadd.f32 %v88, %v357
    %359 = vmatmul.f32.gmra.mxu0 %v152
    %v360 = vpop.f32.mrf.mxu0
    %v361 = vadd.f32 %v88, %v360
    %362 = vmatmul.f32.gmra.mxu0 %v155
    %v363 = vpop.f32.mrf.mxu0
    %v364 = vadd.f32 %v88, %v363
    %365 = vmatmul.f32.gmra.mxu0 %v158
    %v366 = vpop.f32.mrf.mxu0
    %v367 = vadd.f32 %v88, %v366
    %368 = vmatmul.f32.gmra.mxu0 %v161
    %v369 = vpop.f32.mrf.mxu0
    %v370 = vadd.f32 %v88, %v369
    %371 = vmatmul.f32.gmra.mxu0 %v164
    %v372 = vpop.f32.mrf.mxu0
    %v373 = vadd.f32 %v88, %v372
    %374 = vmatmul.f32.gmra.mxu0 %v167
    %v375 = vpop.f32.mrf.mxu0
    %v376 = vadd.f32 %v88, %v375
    %377 = vmatmul.f32.gmra.mxu0 %v170
    %v378 = vpop.f32.mrf.mxu0
    %v379 = vadd.f32 %v88, %v378
    %380 = vmatmul.f32.gmra.mxu0 %v173
    %v381 = vpop.f32.mrf.mxu0
    %v382 = vadd.f32 %v88, %v381
    %383 = vmatmul.f32.gmra.mxu0 %v176
    %v384 = vpop.f32.mrf.mxu0
    %v385 = vadd.f32 %v88, %v384
    %386 = vmatmul.f32.gmra.mxu0 %v179
    %v387 = vpop.f32.mrf.mxu0
    %v388 = vadd.f32 %v88, %v387
    %389 = vmatmul.f32.gmra.mxu0 %v182
    %v390 = vpop.f32.mrf.mxu0
    %v391 = vadd.f32 %v88, %v390
    %392 = vmatmul.f32.gmra.mxu0 %v185
    %v393 = vpop.f32.mrf.mxu0
    %v394 = vadd.f32 %v88, %v393
    %395 = vmatmul.f32.gmra.mxu0 %v188
    %v396 = vpop.f32.mrf.mxu0
    %v397 = vadd.f32 %v88, %v396
    %398 = vmatmul.f32.gmra.mxu0 %v191
    %v399 = vpop.f32.mrf.mxu0
    %v400 = vadd.f32 %v88, %v399
    %401 = vmatmul.f32.gmra.mxu0 %v194
    %v402 = vpop.f32.mrf.mxu0
    %v403 = vadd.f32 %v88, %v402
    %404 = vmatmul.f32.gmra.mxu0 %v197
    %v405 = vpop.f32.mrf.mxu0
    %v406 = vadd.f32 %v88, %v405
    %407 = vmatmul.f32.gmra.mxu0 %v200
    %v408 = vpop.f32.mrf.mxu0
    %v409 = vadd.f32 %v88, %v408
    %410 = vmatmul.f32.gmra.mxu0 %v203
    %v411 = vpop.f32.mrf.mxu0
    %v412 = vadd.f32 %v88, %v411
    %413 = vmatmul.f32.gmra.mxu0 %v206
    %v414 = vpop.f32.mrf.mxu0
    %v415 = vadd.f32 %v88, %v414
    %416 = vmatmul.f32.gmra.mxu0 %v209
    %v417 = vpop.f32.mrf.mxu0
    %v418 = vadd.f32 %v88, %v417
    %419 = vmatmul.f32.gmra.mxu0 %v212
    %v420 = vpop.f32.mrf.mxu0
    %v421 = vadd.f32 %v88, %v420
    %422 = vmatmul.f32.gmra.mxu0 %v215
    %v423 = vpop.f32.mrf.mxu0
    %v424 = vadd.f32 %v88, %v423
    %425 = vmatmul.f32.gmra.mxu0 %v218
    %v426 = vpop.f32.mrf.mxu0
    %v427 = vadd.f32 %v88, %v426
    %428 = vmatmul.f32.gmra.mxu0 %v221
    %v429 = vpop.f32.mrf.mxu0
    %v430 = vadd.f32 %v88, %v429
    %431 = vmatmul.f32.gmra.mxu0 %v224
    %v432 = vpop.f32.mrf.mxu0
    %v433 = vadd.f32 %v88, %v432
    %434 = vmatmul.f32.gmra.mxu0 %v227
    %v435 = vpop.f32.mrf.mxu0
    %v436 = vadd.f32 %v88, %v435
    %437 = vmatmul.f32.gmra.mxu0 %v230
    %v438 = vpop.f32.mrf.mxu0
    %v439 = vadd.f32 %v88, %v438
    %440 = vmatmul.f32.gmra.mxu0 %v233
    %v441 = vpop.f32.mrf.mxu0
    %v442 = vadd.f32 %v88, %v441
    %443 = vmatmul.f32.gmra.mxu0 %v236
    %v444 = vpop.f32.mrf.mxu0
    %v445 = vadd.f32 %v88, %v444
    %446 = vmatmul.f32.gmra.mxu0 %v239
    %v447 = vpop.f32.mrf.mxu0
    %v448 = vadd.f32 %v88, %v447
    %449 = vmatmul.f32.gmra.mxu0 %v242
    %v450 = vpop.f32.mrf.mxu0
    %v451 = vadd.f32 %v88, %v450
    %452 = vmatmul.f32.gmra.mxu0 %v245
    %v453 = vpop.f32.mrf.mxu0
    %v454 = vadd.f32 %v88, %v453
    %455 = vmatmul.f32.gmra.mxu0 %v248
    %v456 = vpop.f32.mrf.mxu0
    %v457 = vadd.f32 %v88, %v456
    %458 = vmatmul.f32.gmra.mxu0 %v251
    %v459 = vpop.f32.mrf.mxu0
    %v460 = vadd.f32 %v88, %v459
    %461 = vmatmul.f32.gmra.mxu0 %v254
    %v462 = vpop.f32.mrf.mxu0
    %v463 = vadd.f32 %v88, %v462
    %464 = vmatmul.f32.gmra.mxu0 %v257
    %v465 = vpop.f32.mrf.mxu0
    %v466 = vadd.f32 %v88, %v465
    %467 = vmatmul.f32.gmra.mxu0 %v260
    %v468 = vpop.f32.mrf.mxu0
    %v469 = vadd.f32 %v88, %v468
    %470 = vmatmul.f32.gmra.mxu0 %v263
    %v471 = vpop.f32.mrf.mxu0
    %v472 = vadd.f32 %v88, %v471
    %473 = vmatmul.f32.gmra.mxu0 %v266
    %v474 = vpop.f32.mrf.mxu0
    %v475 = vadd.f32 %v88, %v474
    %476 = vmatmul.f32.gmra.mxu0 %v269
    %v477 = vpop.f32.mrf.mxu0
    %v478 = vadd.f32 %v88, %v477
    %479 = vmatmul.f32.gmra.mxu0 %v272
    %v480 = vpop.f32.mrf.mxu0
    %v481 = vadd.f32 %v88, %v480
    %482 = vmatmul.f32.gmra.mxu0 %v275
    %v483 = vpop.f32.mrf.mxu0
    %v484 = vadd.f32 %v88, %v483
    %485 = vmatmul.f32.gmra.mxu0 %v278
    %v486 = vpop.f32.mrf.mxu0
    %v487 = vadd.f32 %v88, %v486
    %488 = vmatmul.f32.gmra.mxu0 %v281
    %v489 = vpop.f32.mrf.mxu0
    %v490 = vadd.f32 %v88, %v489
    %491 = vdwg.mxu0
    %v492 = vmax.f32 %v301, 0.0
    %v493 = vmax.f32 %v304, 0.0
    %v494 = vmax.f32 %v307, 0.0
    %v495 = vmax.f32 %v310, 0.0
    %v496 = vmax.f32 %v313, 0.0
    %v497 = vmax.f32 %v316, 0.0
    %v498 = vmax.f32 %v319, 0.0
    %v499 = vmax.f32 %v322, 0.0
    %v500 = vmax.f32 %v325, 0.0
    %v501 = vmax.f32 %v328, 0.0
    %v502 = vmax.f32 %v331, 0.0
    %v503 = vmax.f32 %v334, 0.0
    %v504 = vmax.f32 %v337, 0.0
    %v505 = vmax.f32 %v340, 0.0
    %v506 = vmax.f32 %v343, 0.0
    %v507 = vmax.f32 %v346, 0.0
    %v508 = vmax.f32 %v349, 0.0
    %v509 = vmax.f32 %v352, 0.0
    %v510 = vmax.f32 %v355, 0.0
    %v511 = vmax.f32 %v358, 0.0
    %v512 = vmax.f32 %v361, 0.0
    %v513 = vmax.f32 %v364, 0.0
    %v514 = vmax.f32 %v367, 0.0
    %v515 = vmax.f32 %v370, 0.0
    %v516 = vmax.f32 %v373, 0.0
    %v517 = vmax.f32 %v376, 0.0
    %v518 = vmax.f32 %v379, 0.0
    %v519 = vmax.f32 %v382, 0.0
    %v520 = vmax.f32 %v385, 0.0
    %v521 = vmax.f32 %v388, 0.0
    %v522 = vmax.f32 %v391, 0.0
    %v523 = vmax.f32 %v394, 0.0
    %v524 = vmax.f32 %v397, 0.0
    %v525 = vmax.f32 %v400, 0.0
    %v526 = vmax.f32 %v403, 0.0
    %v527 = vmax.f32 %v406, 0.0
    %v528 = vmax.f32 %v409, 0.0
    %v529 = vmax.f32 %v412, 0.0
    %v530 = vmax.f32 %v415, 0.0
    %v531 = vmax.f32 %v418, 0.0
    %v532 = vmax.f32 %v421, 0.0
    %v533 = vmax.f32 %v424, 0.0
    %v534 = vmax.f32 %v427, 0.0
    %v535 = vmax.f32 %v430, 0.0
    %v536 = vmax.f32 %v433, 0.0
    %v537 = vmax.f32 %v436, 0.0
    %v538 = vmax.f32 %v439, 0.0
    %v539 = vmax.f32 %v442, 0.0
    %v540 = vmax.f32 %v445, 0.0
    %v541 = vmax.f32 %v448, 0.0
    %v542 = vmax.f32 %v451, 0.0
    %v543 = vmax.f32 %v454, 0.0
    %v544 = vmax.f32 %v457, 0.0
    %v545 = vmax.f32 %v460, 0.0
    %v546 = vmax.f32 %v463, 0.0
    %v547 = vmax.f32 %v466, 0.0
    %v548 = vmax.f32 %v469, 0.0
    %v549 = vmax.f32 %v472, 0.0
    %v550 = vmax.f32 %v475, 0.0
    %v551 = vmax.f32 %v478, 0.0
    %v552 = vmax.f32 %v481, 0.0
    %v553 = vmax.f32 %v484, 0.0
    %v554 = vmax.f32 %v487, 0.0
    %v555 = vmax.f32 %v490, 0.0
    %v556 = vmul.f32 %v492, %v492
    %v557 = vmul.f32 %v493, %v493
    %v558 = vmul.f32 %v494, %v494
    %v559 = vmul.f32 %v495, %v495
    %v560 = vmul.f32 %v496, %v496
    %v561 = vmul.f32 %v497, %v497
    %v562 = vmul.f32 %v498, %v498
    %v563 = vmul.f32 %v499, %v499
    %v564 = vmul.f32 %v500, %v500
    %v565 = vmul.f32 %v501, %v501
    %v566 = vmul.f32 %v502, %v502
    %v567 = vmul.f32 %v503, %v503
    %v568 = vmul.f32 %v504, %v504
    %v569 = vmul.f32 %v505, %v505
    %v570 = vmul.f32 %v506, %v506
    %v571 = vmul.f32 %v507, %v507
    %v572 = vmul.f32 %v508, %v508
    %v573 = vmul.f32 %v509, %v509
    %v574 = vmul.f32 %v510, %v510
    %v575 = vmul.f32 %v511, %v511
    %v576 = vmul.f32 %v512, %v512
    %v577 = vmul.f32 %v513, %v513
    %v578 = vmul.f32 %v514, %v514
    %v579 = vmul.f32 %v515, %v515
    %v580 = vmul.f32 %v516, %v516
    %v581 = vmul.f32 %v517, %v517
    %v582 = vmul.f32 %v518, %v518
    %v583 = vmul.f32 %v519, %v519
    %v584 = vmul.f32 %v520, %v520
    %v585 = vmul.f32 %v521, %v521
    %v586 = vmul.f32 %v522, %v522
    %v587 = vmul.f32 %v523, %v523
    %v588 = vmul.f32 %v524, %v524
    %v589 = vmul.f32 %v525, %v525
    %v590 = vmul.f32 %v526, %v526
    %v591 = vmul.f32 %v527, %v527
    %v592 = vmul.f32 %v528, %v528
    %v593 = vmul.f32 %v529, %v529
    %v594 = vmul.f32 %v530, %v530
    %v595 = vmul.f32 %v531, %v531
    %v596 = vmul.f32 %v532, %v532
    %v597 = vmul.f32 %v533, %v533
    %v598 = vmul.f32 %v534, %v534
    %v599 = vmul.f32 %v535, %v535
    %v600 = vmul.f32 %v536, %v536
    %v601 = vmul.f32 %v537, %v537
    %v602 = vmul.f32 %v538, %v538
    %v603 = vmul.f32 %v539, %v539
    %v604 = vmul.f32 %v540, %v540
    %v605 = vmul.f32 %v541, %v541
    %v606 = vmul.f32 %v542, %v542
    %v607 = vmul.f32 %v543, %v543
    %v608 = vmul.f32 %v544, %v544
    %v609 = vmul.f32 %v545, %v545
    %v610 = vmul.f32 %v546, %v546
    %v611 = vmul.f32 %v547, %v547
    %v612 = vmul.f32 %v548, %v548
    %v613 = vmul.f32 %v549, %v549
    %v614 = vmul.f32 %v550, %v550
    %v615 = vmul.f32 %v551, %v551
    %v616 = vmul.f32 %v552, %v552
    %v617 = vmul.f32 %v553, %v553
    %v618 = vmul.f32 %v554, %v554
    %v619 = vmul.f32 %v555, %v555
    %620 = vadd.xlane.f32.xlu0 %v556
    %v621 = vpop.xlane.xlu0 %620
    %622 = vadd.xlane.f32.xlu0 %v557
    %v623 = vpop.xlane.xlu0 %622
    %624 = vadd.xlane.f32.xlu0 %v558
    %v625 = vpop.xlane.xlu0 %624
    %626 = vadd.xlane.f32.xlu0 %v559
    %v627 = vpop.xlane.xlu0 %626
    %628 = vadd.xlane.f32.xlu0 %v560
    %v629 = vpop.xlane.xlu0 %628
    %630 = vadd.xlane.f32.xlu0 %v561
    %v631 = vpop.xlane.xlu0 %630
    %632 = vadd.xlane.f32.xlu0 %v562
    %v633 = vpop.xlane.xlu0 %632
    %634 = vadd.xlane.f32.xlu0 %v563
    %v635 = vpop.xlane.xlu0 %634
    %636 = vadd.xlane.f32.xlu0 %v564
    %v637 = vpop.xlane.xlu0 %636
    %638 = vadd.xlane.f32.xlu0 %v565
    %v639 = vpop.xlane.xlu0 %638
    %640 = vadd.xlane.f32.xlu0 %v566
    %v641 = vpop.xlane.xlu0 %640
    %642 = vadd.xlane.f32.xlu0 %v567
    %v643 = vpop.xlane.xlu0 %642
    %644 = vadd.xlane.f32.xlu0 %v568
    %v645 = vpop.xlane.xlu0 %644
    %646 = vadd.xlane.f32.xlu0 %v569
    %v647 = vpop.xlane.xlu0 %646
    %648 = vadd.xlane.f32.xlu0 %v570
    %v649 = vpop.xlane.xlu0 %648
    %650 = vadd.xlane.f32.xlu0 %v571
    %v651 = vpop.xlane.xlu0 %650
    %652 = vadd.xlane.f32.xlu0 %v572
    %v653 = vpop.xlane.xlu0 %652
    %654 = vadd.xlane.f32.xlu0 %v573
    %v655 = vpop.xlane.xlu0 %654
    %656 = vadd.xlane.f32.xlu0 %v574
    %v657 = vpop.xlane.xlu0 %656
    %658 = vadd.xlane.f32.xlu0 %v575
    %v659 = vpop.xlane.xlu0 %658
    %660 = vadd.xlane.f32.xlu0 %v576
    %v661 = vpop.xlane.xlu0 %660
    %662 = vadd.xlane.f32.xlu0 %v577
    %v663 = vpop.xlane.xlu0 %662
    %664 = vadd.xlane.f32.xlu0 %v578
    %v665 = vpop.xlane.xlu0 %664
    %666 = vadd.xlane.f32.xlu0 %v579
    %v667 = vpop.xlane.xlu0 %666
    %668 = vadd.xlane.f32.xlu0 %v580
    %v669 = vpop.xlane.xlu0 %668
    %670 = vadd.xlane.f32.xlu0 %v581
    %v671 = vpop.xlane.xlu0 %670
    %672 = vadd.xlane.f32.xlu0 %v582
    %v673 = vpop.xlane.xlu0 %672
    %674 = vadd.xlane.f32.xlu0 %v583
    %v675 = vpop.xlane.xlu0 %674
    %676 = vadd.xlane.f32.xlu0 %v584
    %v677 = vpop.xlane.xlu0 %676
    %678 = vadd.xlane.f32.xlu0 %v585
    %v679 = vpop.xlane.xlu0 %678
    %680 = vadd.xlane.f32.xlu0 %v586
    %v681 = vpop.xlane.xlu0 %680
    %682 = vadd.xlane.f32.xlu0 %v587
    %v683 = vpop.xlane.xlu0 %682
    %684 = vadd.xlane.f32.xlu0 %v588
    %v685 = vpop.xlane.xlu0 %684
    %686 = vadd.xlane.f32.xlu0 %v589
    %v687 = vpop.xlane.xlu0 %686
    %688 = vadd.xlane.f32.xlu0 %v590
    %v689 = vpop.xlane.xlu0 %688
    %690 = vadd.xlane.f32.xlu0 %v591
    %v691 = vpop.xlane.xlu0 %690
    %692 = vadd.xlane.f32.xlu0 %v592
    %v693 = vpop.xlane.xlu0 %692
    %694 = vadd.xlane.f32.xlu0 %v593
    %v695 = vpop.xlane.xlu0 %694
    %696 = vadd.xlane.f32.xlu0 %v594
    %v697 = vpop.xlane.xlu0 %696
    %698 = vadd.xlane.f32.xlu0 %v595
    %v699 = vpop.xlane.xlu0 %698
    %700 = vadd.xlane.f32.xlu0 %v596
    %v701 = vpop.xlane.xlu0 %700
    %702 = vadd.xlane.f32.xlu0 %v597
    %v703 = vpop.xlane.xlu0 %702
    %704 = vadd.xlane.f32.xlu0 %v598
    %v705 = vpop.xlane.xlu0 %704
    %706 = vadd.xlane.f32.xlu0 %v599
    %v707 = vpop.xlane.xlu0 %706
    %708 = vadd.xlane.f32.xlu0 %v600
    %v709 = vpop.xlane.xlu0 %708
    %710 = vadd.xlane.f32.xlu0 %v601
    %v711 = vpop.xlane.xlu0 %710
    %712 = vadd.xlane.f32.xlu0 %v602
    %v713 = vpop.xlane.xlu0 %712
    %714 = vadd.xlane.f32.xlu0 %v603
    %v715 = vpop.xlane.xlu0 %714
    %716 = vadd.xlane.f32.xlu0 %v604
    %v717 = vpop.xlane.xlu0 %716
    %718 = vadd.xlane.f32.xlu0 %v605
    %v719 = vpop.xlane.xlu0 %718
    %720 = vadd.xlane.f32.xlu0 %v606
    %v721 = vpop.xlane.xlu0 %720
    %722 = vadd.xlane.f32.xlu0 %v607
    %v723 = vpop.xlane.xlu0 %722
    %724 = vadd.xlane.f32.xlu0 %v608
    %v725 = vpop.xlane.xlu0 %724
    %726 = vadd.xlane.f32.xlu0 %v609
    %v727 = vpop.xlane.xlu0 %726
    %728 = vadd.xlane.f32.xlu0 %v610
    %v729 = vpop.xlane.xlu0 %728
    %730 = vadd.xlane.f32.xlu0 %v611
    %v731 = vpop.xlane.xlu0 %730
    %732 = vadd.xlane.f32.xlu0 %v612
    %v733 = vpop.xlane.xlu0 %732
    %734 = vadd.xlane.f32.xlu0 %v613
    %v735 = vpop.xlane.xlu0 %734
    %736 = vadd.xlane.f32.xlu0 %v614
    %v737 = vpop.xlane.xlu0 %736
    %738 = vadd.xlane.f32.xlu0 %v615
    %v739 = vpop.xlane.xlu0 %738
    %740 = vadd.xlane.f32.xlu0 %v616
    %v741 = vpop.xlane.xlu0 %740
    %742 = vadd.xlane.f32.xlu0 %v617
    %v743 = vpop.xlane.xlu0 %742
    %744 = vadd.xlane.f32.xlu0 %v618
    %v745 = vpop.xlane.xlu0 %744
    %746 = vadd.xlane.f32.xlu0 %v619
    %v747 = vpop.xlane.xlu0 %746
    %v748 = vmax.f32 %v621, 1e-24
    %v749 = vmax.f32 %v623, 1e-24
    %v750 = vmax.f32 %v625, 1e-24
    %v751 = vmax.f32 %v627, 1e-24
    %v752 = vmax.f32 %v629, 1e-24
    %v753 = vmax.f32 %v631, 1e-24
    %v754 = vmax.f32 %v633, 1e-24
    %v755 = vmax.f32 %v635, 1e-24
    %v756 = vmax.f32 %v637, 1e-24
    %v757 = vmax.f32 %v639, 1e-24
    %v758 = vmax.f32 %v641, 1e-24
    %v759 = vmax.f32 %v643, 1e-24
    %v760 = vmax.f32 %v645, 1e-24
    %v761 = vmax.f32 %v647, 1e-24
    %v762 = vmax.f32 %v649, 1e-24
    %v763 = vmax.f32 %v651, 1e-24
    %v764 = vmax.f32 %v653, 1e-24
    %v765 = vmax.f32 %v655, 1e-24
    %v766 = vmax.f32 %v657, 1e-24
    %v767 = vmax.f32 %v659, 1e-24
    %v768 = vmax.f32 %v661, 1e-24
    %v769 = vmax.f32 %v663, 1e-24
    %v770 = vmax.f32 %v665, 1e-24
    %v771 = vmax.f32 %v667, 1e-24
    %v772 = vmax.f32 %v669, 1e-24
    %v773 = vmax.f32 %v671, 1e-24
    %v774 = vmax.f32 %v673, 1e-24
    %v775 = vmax.f32 %v675, 1e-24
    %v776 = vmax.f32 %v677, 1e-24
    %v777 = vmax.f32 %v679, 1e-24
    %v778 = vmax.f32 %v681, 1e-24
    %v779 = vmax.f32 %v683, 1e-24
    %v780 = vmax.f32 %v685, 1e-24
    %v781 = vmax.f32 %v687, 1e-24
    %v782 = vmax.f32 %v689, 1e-24
    %v783 = vmax.f32 %v691, 1e-24
    %v784 = vmax.f32 %v693, 1e-24
    %v785 = vmax.f32 %v695, 1e-24
    %v786 = vmax.f32 %v697, 1e-24
    %v787 = vmax.f32 %v699, 1e-24
    %v788 = vmax.f32 %v701, 1e-24
    %v789 = vmax.f32 %v703, 1e-24
    %v790 = vmax.f32 %v705, 1e-24
    %v791 = vmax.f32 %v707, 1e-24
    %v792 = vmax.f32 %v709, 1e-24
    %v793 = vmax.f32 %v711, 1e-24
    %v794 = vmax.f32 %v713, 1e-24
    %v795 = vmax.f32 %v715, 1e-24
    %v796 = vmax.f32 %v717, 1e-24
    %v797 = vmax.f32 %v719, 1e-24
    %v798 = vmax.f32 %v721, 1e-24
    %v799 = vmax.f32 %v723, 1e-24
    %v800 = vmax.f32 %v725, 1e-24
    %v801 = vmax.f32 %v727, 1e-24
    %v802 = vmax.f32 %v729, 1e-24
    %v803 = vmax.f32 %v731, 1e-24
    %v804 = vmax.f32 %v733, 1e-24
    %v805 = vmax.f32 %v735, 1e-24
    %v806 = vmax.f32 %v737, 1e-24
    %v807 = vmax.f32 %v739, 1e-24
    %v808 = vmax.f32 %v741, 1e-24
    %v809 = vmax.f32 %v743, 1e-24
    %v810 = vmax.f32 %v745, 1e-24
    %v811 = vmax.f32 %v747, 1e-24
    %v812 = vrsqrt.pop %v748
    %v813 = vmul.f32 %v812, %v748
    %v814 = vmul.f32 %v813, %v812
    %v815 = vmul.f32 0.5, %v814
    %v816 = vsub.f32 1.5, %v815
    %v817 = vmul.f32 %v812, %v816
    %vm818 = vweird.f32 %v748
    %vm819 = vweird.f32 %v812
    %vm820 = vmor %vm818, %vm819
    %v821 = vsel %vm820, %v812, %v817
    %v822 = vrsqrt.pop %v749
    %v823 = vmul.f32 %v822, %v749
    %v824 = vmul.f32 %v823, %v822
    %v825 = vmul.f32 0.5, %v824
    %v826 = vsub.f32 1.5, %v825
    %v827 = vmul.f32 %v822, %v826
    %vm828 = vweird.f32 %v749
    %vm829 = vweird.f32 %v822
    %vm830 = vmor %vm828, %vm829
    %v831 = vsel %vm830, %v822, %v827
    %v832 = vrsqrt.pop %v750
    %v833 = vmul.f32 %v832, %v750
    %v834 = vmul.f32 %v833, %v832
    %v835 = vmul.f32 0.5, %v834
    %v836 = vsub.f32 1.5, %v835
    %v837 = vmul.f32 %v832, %v836
    %vm838 = vweird.f32 %v750
    %vm839 = vweird.f32 %v832
    %vm840 = vmor %vm838, %vm839
    %v841 = vsel %vm840, %v832, %v837
    %v842 = vrsqrt.pop %v751
    %v843 = vmul.f32 %v842, %v751
    %v844 = vmul.f32 %v843, %v842
    %v845 = vmul.f32 0.5, %v844
    %v846 = vsub.f32 1.5, %v845
    %v847 = vmul.f32 %v842, %v846
    %vm848 = vweird.f32 %v751
    %vm849 = vweird.f32 %v842
    %vm850 = vmor %vm848, %vm849
    %v851 = vsel %vm850, %v842, %v847
    %v852 = vrsqrt.pop %v752
    %v853 = vmul.f32 %v852, %v752
    %v854 = vmul.f32 %v853, %v852
    %v855 = vmul.f32 0.5, %v854
    %v856 = vsub.f32 1.5, %v855
    %v857 = vmul.f32 %v852, %v856
    %vm858 = vweird.f32 %v752
    %vm859 = vweird.f32 %v852
    %vm860 = vmor %vm858, %vm859
    %v861 = vsel %vm860, %v852, %v857
    %v862 = vrsqrt.pop %v753
    %v863 = vmul.f32 %v862, %v753
    %v864 = vmul.f32 %v863, %v862
    %v865 = vmul.f32 0.5, %v864
    %v866 = vsub.f32 1.5, %v865
    %v867 = vmul.f32 %v862, %v866
    %vm868 = vweird.f32 %v753
    %vm869 = vweird.f32 %v862
    %vm870 = vmor %vm868, %vm869
    %v871 = vsel %vm870, %v862, %v867
    %v872 = vrsqrt.pop %v754
    %v873 = vmul.f32 %v872, %v754
    %v874 = vmul.f32 %v873, %v872
    %v875 = vmul.f32 0.5, %v874
    %v876 = vsub.f32 1.5, %v875
    %v877 = vmul.f32 %v872, %v876
    %vm878 = vweird.f32 %v754
    %vm879 = vweird.f32 %v872
    %vm880 = vmor %vm878, %vm879
    %v881 = vsel %vm880, %v872, %v877
    %v882 = vrsqrt.pop %v755
    %v883 = vmul.f32 %v882, %v755
    %v884 = vmul.f32 %v883, %v882
    %v885 = vmul.f32 0.5, %v884
    %v886 = vsub.f32 1.5, %v885
    %v887 = vmul.f32 %v882, %v886
    %vm888 = vweird.f32 %v755
    %vm889 = vweird.f32 %v882
    %vm890 = vmor %vm888, %vm889
    %v891 = vsel %vm890, %v882, %v887
    %v892 = vrsqrt.pop %v756
    %v893 = vmul.f32 %v892, %v756
    %v894 = vmul.f32 %v893, %v892
    %v895 = vmul.f32 0.5, %v894
    %v896 = vsub.f32 1.5, %v895
    %v897 = vmul.f32 %v892, %v896
    %vm898 = vweird.f32 %v756
    %vm899 = vweird.f32 %v892
    %vm900 = vmor %vm898, %vm899
    %v901 = vsel %vm900, %v892, %v897
    %v902 = vrsqrt.pop %v757
    %v903 = vmul.f32 %v902, %v757
    %v904 = vmul.f32 %v903, %v902
    %v905 = vmul.f32 0.5, %v904
    %v906 = vsub.f32 1.5, %v905
    %v907 = vmul.f32 %v902, %v906
    %vm908 = vweird.f32 %v757
    %vm909 = vweird.f32 %v902
    %vm910 = vmor %vm908, %vm909
    %v911 = vsel %vm910, %v902, %v907
    %v912 = vrsqrt.pop %v758
    %v913 = vmul.f32 %v912, %v758
    %v914 = vmul.f32 %v913, %v912
    %v915 = vmul.f32 0.5, %v914
    %v916 = vsub.f32 1.5, %v915
    %v917 = vmul.f32 %v912, %v916
    %vm918 = vweird.f32 %v758
    %vm919 = vweird.f32 %v912
    %vm920 = vmor %vm918, %vm919
    %v921 = vsel %vm920, %v912, %v917
    %v922 = vrsqrt.pop %v759
    %v923 = vmul.f32 %v922, %v759
    %v924 = vmul.f32 %v923, %v922
    %v925 = vmul.f32 0.5, %v924
    %v926 = vsub.f32 1.5, %v925
    %v927 = vmul.f32 %v922, %v926
    %vm928 = vweird.f32 %v759
    %vm929 = vweird.f32 %v922
    %vm930 = vmor %vm928, %vm929
    %v931 = vsel %vm930, %v922, %v927
    %v932 = vrsqrt.pop %v760
    %v933 = vmul.f32 %v932, %v760
    %v934 = vmul.f32 %v933, %v932
    %v935 = vmul.f32 0.5, %v934
    %v936 = vsub.f32 1.5, %v935
    %v937 = vmul.f32 %v932, %v936
    %vm938 = vweird.f32 %v760
    %vm939 = vweird.f32 %v932
    %vm940 = vmor %vm938, %vm939
    %v941 = vsel %vm940, %v932, %v937
    %v942 = vrsqrt.pop %v761
    %v943 = vmul.f32 %v942, %v761
    %v944 = vmul.f32 %v943, %v942
    %v945 = vmul.f32 0.5, %v944
    %v946 = vsub.f32 1.5, %v945
    %v947 = vmul.f32 %v942, %v946
    %vm948 = vweird.f32 %v761
    %vm949 = vweird.f32 %v942
    %vm950 = vmor %vm948, %vm949
    %v951 = vsel %vm950, %v942, %v947
    %v952 = vrsqrt.pop %v762
    %v953 = vmul.f32 %v952, %v762
    %v954 = vmul.f32 %v953, %v952
    %v955 = vmul.f32 0.5, %v954
    %v956 = vsub.f32 1.5, %v955
    %v957 = vmul.f32 %v952, %v956
    %vm958 = vweird.f32 %v762
    %vm959 = vweird.f32 %v952
    %vm960 = vmor %vm958, %vm959
    %v961 = vsel %vm960, %v952, %v957
    %v962 = vrsqrt.pop %v763
    %v963 = vmul.f32 %v962, %v763
    %v964 = vmul.f32 %v963, %v962
    %v965 = vmul.f32 0.5, %v964
    %v966 = vsub.f32 1.5, %v965
    %v967 = vmul.f32 %v962, %v966
    %vm968 = vweird.f32 %v763
    %vm969 = vweird.f32 %v962
    %vm970 = vmor %vm968, %vm969
    %v971 = vsel %vm970, %v962, %v967
    %v972 = vrsqrt.pop %v764
    %v973 = vmul.f32 %v972, %v764
    %v974 = vmul.f32 %v973, %v972
    %v975 = vmul.f32 0.5, %v974
    %v976 = vsub.f32 1.5, %v975
    %v977 = vmul.f32 %v972, %v976
    %vm978 = vweird.f32 %v764
    %vm979 = vweird.f32 %v972
    %vm980 = vmor %vm978, %vm979
    %v981 = vsel %vm980, %v972, %v977
    %v982 = vrsqrt.pop %v765
    %v983 = vmul.f32 %v982, %v765
    %v984 = vmul.f32 %v983, %v982
    %v985 = vmul.f32 0.5, %v984
    %v986 = vsub.f32 1.5, %v985
    %v987 = vmul.f32 %v982, %v986
    %vm988 = vweird.f32 %v765
    %vm989 = vweird.f32 %v982
    %vm990 = vmor %vm988, %vm989
    %v991 = vsel %vm990, %v982, %v987
    %v992 = vrsqrt.pop %v766
    %v993 = vmul.f32 %v992, %v766
    %v994 = vmul.f32 %v993, %v992
    %v995 = vmul.f32 0.5, %v994
    %v996 = vsub.f32 1.5, %v995
    %v997 = vmul.f32 %v992, %v996
    %vm998 = vweird.f32 %v766
    %vm999 = vweird.f32 %v992
    %vm1000 = vmor %vm998, %vm999
    %v1001 = vsel %vm1000, %v992, %v997
    %v1002 = vrsqrt.pop %v767
    %v1003 = vmul.f32 %v1002, %v767
    %v1004 = vmul.f32 %v1003, %v1002
    %v1005 = vmul.f32 0.5, %v1004
    %v1006 = vsub.f32 1.5, %v1005
    %v1007 = vmul.f32 %v1002, %v1006
    %vm1008 = vweird.f32 %v767
    %vm1009 = vweird.f32 %v1002
    %vm1010 = vmor %vm1008, %vm1009
    %v1011 = vsel %vm1010, %v1002, %v1007
    %v1012 = vrsqrt.pop %v768
    %v1013 = vmul.f32 %v1012, %v768
    %v1014 = vmul.f32 %v1013, %v1012
    %v1015 = vmul.f32 0.5, %v1014
    %v1016 = vsub.f32 1.5, %v1015
    %v1017 = vmul.f32 %v1012, %v1016
    %vm1018 = vweird.f32 %v768
    %vm1019 = vweird.f32 %v1012
    %vm1020 = vmor %vm1018, %vm1019
    %v1021 = vsel %vm1020, %v1012, %v1017
    %v1022 = vrsqrt.pop %v769
    %v1023 = vmul.f32 %v1022, %v769
    %v1024 = vmul.f32 %v1023, %v1022
    %v1025 = vmul.f32 0.5, %v1024
    %v1026 = vsub.f32 1.5, %v1025
    %v1027 = vmul.f32 %v1022, %v1026
    %vm1028 = vweird.f32 %v769
    %vm1029 = vweird.f32 %v1022
    %vm1030 = vmor %vm1028, %vm1029
    %v1031 = vsel %vm1030, %v1022, %v1027
    %v1032 = vrsqrt.pop %v770
    %v1033 = vmul.f32 %v1032, %v770
    %v1034 = vmul.f32 %v1033, %v1032
    %v1035 = vmul.f32 0.5, %v1034
    %v1036 = vsub.f32 1.5, %v1035
    %v1037 = vmul.f32 %v1032, %v1036
    %vm1038 = vweird.f32 %v770
    %vm1039 = vweird.f32 %v1032
    %vm1040 = vmor %vm1038, %vm1039
    %v1041 = vsel %vm1040, %v1032, %v1037
    %v1042 = vrsqrt.pop %v771
    %v1043 = vmul.f32 %v1042, %v771
    %v1044 = vmul.f32 %v1043, %v1042
    %v1045 = vmul.f32 0.5, %v1044
    %v1046 = vsub.f32 1.5, %v1045
    %v1047 = vmul.f32 %v1042, %v1046
    %vm1048 = vweird.f32 %v771
    %vm1049 = vweird.f32 %v1042
    %vm1050 = vmor %vm1048, %vm1049
    %v1051 = vsel %vm1050, %v1042, %v1047
    %v1052 = vrsqrt.pop %v772
    %v1053 = vmul.f32 %v1052, %v772
    %v1054 = vmul.f32 %v1053, %v1052
    %v1055 = vmul.f32 0.5, %v1054
    %v1056 = vsub.f32 1.5, %v1055
    %v1057 = vmul.f32 %v1052, %v1056
    %vm1058 = vweird.f32 %v772
    %vm1059 = vweird.f32 %v1052
    %vm1060 = vmor %vm1058, %vm1059
    %v1061 = vsel %vm1060, %v1052, %v1057
    %v1062 = vrsqrt.pop %v773
    %v1063 = vmul.f32 %v1062, %v773
    %v1064 = vmul.f32 %v1063, %v1062
    %v1065 = vmul.f32 0.5, %v1064
    %v1066 = vsub.f32 1.5, %v1065
    %v1067 = vmul.f32 %v1062, %v1066
    %vm1068 = vweird.f32 %v773
    %vm1069 = vweird.f32 %v1062
    %vm1070 = vmor %vm1068, %vm1069
    %v1071 = vsel %vm1070, %v1062, %v1067
    %v1072 = vrsqrt.pop %v774
    %v1073 = vmul.f32 %v1072, %v774
    %v1074 = vmul.f32 %v1073, %v1072
    %v1075 = vmul.f32 0.5, %v1074
    %v1076 = vsub.f32 1.5, %v1075
    %v1077 = vmul.f32 %v1072, %v1076
    %vm1078 = vweird.f32 %v774
    %vm1079 = vweird.f32 %v1072
    %vm1080 = vmor %vm1078, %vm1079
    %v1081 = vsel %vm1080, %v1072, %v1077
    %v1082 = vrsqrt.pop %v775
    %v1083 = vmul.f32 %v1082, %v775
    %v1084 = vmul.f32 %v1083, %v1082
    %v1085 = vmul.f32 0.5, %v1084
    %v1086 = vsub.f32 1.5, %v1085
    %v1087 = vmul.f32 %v1082, %v1086
    %vm1088 = vweird.f32 %v775
    %vm1089 = vweird.f32 %v1082
    %vm1090 = vmor %vm1088, %vm1089
    %v1091 = vsel %vm1090, %v1082, %v1087
    %v1092 = vrsqrt.pop %v776
    %v1093 = vmul.f32 %v1092, %v776
    %v1094 = vmul.f32 %v1093, %v1092
    %v1095 = vmul.f32 0.5, %v1094
    %v1096 = vsub.f32 1.5, %v1095
    %v1097 = vmul.f32 %v1092, %v1096
    %vm1098 = vweird.f32 %v776
    %vm1099 = vweird.f32 %v1092
    %vm1100 = vmor %vm1098, %vm1099
    %v1101 = vsel %vm1100, %v1092, %v1097
    %v1102 = vrsqrt.pop %v777
    %v1103 = vmul.f32 %v1102, %v777
    %v1104 = vmul.f32 %v1103, %v1102
    %v1105 = vmul.f32 0.5, %v1104
    %v1106 = vsub.f32 1.5, %v1105
    %v1107 = vmul.f32 %v1102, %v1106
    %vm1108 = vweird.f32 %v777
    %vm1109 = vweird.f32 %v1102
    %vm1110 = vmor %vm1108, %vm1109
    %v1111 = vsel %vm1110, %v1102, %v1107
    %v1112 = vrsqrt.pop %v778
    %v1113 = vmul.f32 %v1112, %v778
    %v1114 = vmul.f32 %v1113, %v1112
    %v1115 = vmul.f32 0.5, %v1114
    %v1116 = vsub.f32 1.5, %v1115
    %v1117 = vmul.f32 %v1112, %v1116
    %vm1118 = vweird.f32 %v778
    %vm1119 = vweird.f32 %v1112
    %vm1120 = vmor %vm1118, %vm1119
    %v1121 = vsel %vm1120, %v1112, %v1117
    %v1122 = vrsqrt.pop %v779
    %v1123 = vmul.f32 %v1122, %v779
    %v1124 = vmul.f32 %v1123, %v1122
    %v1125 = vmul.f32 0.5, %v1124
    %v1126 = vsub.f32 1.5, %v1125
    %v1127 = vmul.f32 %v1122, %v1126
    %vm1128 = vweird.f32 %v779
    %vm1129 = vweird.f32 %v1122
    %vm1130 = vmor %vm1128, %vm1129
    %v1131 = vsel %vm1130, %v1122, %v1127
    %v1132 = vrsqrt.pop %v780
    %v1133 = vmul.f32 %v1132, %v780
    %v1134 = vmul.f32 %v1133, %v1132
    %v1135 = vmul.f32 0.5, %v1134
    %v1136 = vsub.f32 1.5, %v1135
    %v1137 = vmul.f32 %v1132, %v1136
    %vm1138 = vweird.f32 %v780
    %vm1139 = vweird.f32 %v1132
    %vm1140 = vmor %vm1138, %vm1139
    %v1141 = vsel %vm1140, %v1132, %v1137
    %v1142 = vrsqrt.pop %v781
    %v1143 = vmul.f32 %v1142, %v781
    %v1144 = vmul.f32 %v1143, %v1142
    %v1145 = vmul.f32 0.5, %v1144
    %v1146 = vsub.f32 1.5, %v1145
    %v1147 = vmul.f32 %v1142, %v1146
    %vm1148 = vweird.f32 %v781
    %vm1149 = vweird.f32 %v1142
    %vm1150 = vmor %vm1148, %vm1149
    %v1151 = vsel %vm1150, %v1142, %v1147
    %v1152 = vrsqrt.pop %v782
    %v1153 = vmul.f32 %v1152, %v782
    %v1154 = vmul.f32 %v1153, %v1152
    %v1155 = vmul.f32 0.5, %v1154
    %v1156 = vsub.f32 1.5, %v1155
    %v1157 = vmul.f32 %v1152, %v1156
    %vm1158 = vweird.f32 %v782
    %vm1159 = vweird.f32 %v1152
    %vm1160 = vmor %vm1158, %vm1159
    %v1161 = vsel %vm1160, %v1152, %v1157
    %v1162 = vrsqrt.pop %v783
    %v1163 = vmul.f32 %v1162, %v783
    %v1164 = vmul.f32 %v1163, %v1162
    %v1165 = vmul.f32 0.5, %v1164
    %v1166 = vsub.f32 1.5, %v1165
    %v1167 = vmul.f32 %v1162, %v1166
    %vm1168 = vweird.f32 %v783
    %vm1169 = vweird.f32 %v1162
    %vm1170 = vmor %vm1168, %vm1169
    %v1171 = vsel %vm1170, %v1162, %v1167
    %v1172 = vrsqrt.pop %v784
    %v1173 = vmul.f32 %v1172, %v784
    %v1174 = vmul.f32 %v1173, %v1172
    %v1175 = vmul.f32 0.5, %v1174
    %v1176 = vsub.f32 1.5, %v1175
    %v1177 = vmul.f32 %v1172, %v1176
    %vm1178 = vweird.f32 %v784
    %vm1179 = vweird.f32 %v1172
    %vm1180 = vmor %vm1178, %vm1179
    %v1181 = vsel %vm1180, %v1172, %v1177
    %v1182 = vrsqrt.pop %v785
    %v1183 = vmul.f32 %v1182, %v785
    %v1184 = vmul.f32 %v1183, %v1182
    %v1185 = vmul.f32 0.5, %v1184
    %v1186 = vsub.f32 1.5, %v1185
    %v1187 = vmul.f32 %v1182, %v1186
    %vm1188 = vweird.f32 %v785
    %vm1189 = vweird.f32 %v1182
    %vm1190 = vmor %vm1188, %vm1189
    %v1191 = vsel %vm1190, %v1182, %v1187
    %v1192 = vrsqrt.pop %v786
    %v1193 = vmul.f32 %v1192, %v786
    %v1194 = vmul.f32 %v1193, %v1192
    %v1195 = vmul.f32 0.5, %v1194
    %v1196 = vsub.f32 1.5, %v1195
    %v1197 = vmul.f32 %v1192, %v1196
    %vm1198 = vweird.f32 %v786
    %vm1199 = vweird.f32 %v1192
    %vm1200 = vmor %vm1198, %vm1199
    %v1201 = vsel %vm1200, %v1192, %v1197
    %v1202 = vrsqrt.pop %v787
    %v1203 = vmul.f32 %v1202, %v787
    %v1204 = vmul.f32 %v1203, %v1202
    %v1205 = vmul.f32 0.5, %v1204
    %v1206 = vsub.f32 1.5, %v1205
    %v1207 = vmul.f32 %v1202, %v1206
    %vm1208 = vweird.f32 %v787
    %vm1209 = vweird.f32 %v1202
    %vm1210 = vmor %vm1208, %vm1209
    %v1211 = vsel %vm1210, %v1202, %v1207
    %v1212 = vrsqrt.pop %v788
    %v1213 = vmul.f32 %v1212, %v788
    %v1214 = vmul.f32 %v1213, %v1212
    %v1215 = vmul.f32 0.5, %v1214
    %v1216 = vsub.f32 1.5, %v1215
    %v1217 = vmul.f32 %v1212, %v1216
    %vm1218 = vweird.f32 %v788
    %vm1219 = vweird.f32 %v1212
    %vm1220 = vmor %vm1218, %vm1219
    %v1221 = vsel %vm1220, %v1212, %v1217
    %v1222 = vrsqrt.pop %v789
    %v1223 = vmul.f32 %v1222, %v789
    %v1224 = vmul.f32 %v1223, %v1222
    %v1225 = vmul.f32 0.5, %v1224
    %v1226 = vsub.f32 1.5, %v1225
    %v1227 = vmul.f32 %v1222, %v1226
    %vm1228 = vweird.f32 %v789
    %vm1229 = vweird.f32 %v1222
    %vm1230 = vmor %vm1228, %vm1229
    %v1231 = vsel %vm1230, %v1222, %v1227
    %v1232 = vrsqrt.pop %v790
    %v1233 = vmul.f32 %v1232, %v790
    %v1234 = vmul.f32 %v1233, %v1232
    %v1235 = vmul.f32 0.5, %v1234
    %v1236 = vsub.f32 1.5, %v1235
    %v1237 = vmul.f32 %v1232, %v1236
    %vm1238 = vweird.f32 %v790
    %vm1239 = vweird.f32 %v1232
    %vm1240 = vmor %vm1238, %vm1239
    %v1241 = vsel %vm1240, %v1232, %v1237
    %v1242 = vrsqrt.pop %v791
    %v1243 = vmul.f32 %v1242, %v791
    %v1244 = vmul.f32 %v1243, %v1242
    %v1245 = vmul.f32 0.5, %v1244
    %v1246 = vsub.f32 1.5, %v1245
    %v1247 = vmul.f32 %v1242, %v1246
    %vm1248 = vweird.f32 %v791
    %vm1249 = vweird.f32 %v1242
    %vm1250 = vmor %vm1248, %vm1249
    %v1251 = vsel %vm1250, %v1242, %v1247
    %v1252 = vrsqrt.pop %v792
    %v1253 = vmul.f32 %v1252, %v792
    %v1254 = vmul.f32 %v1253, %v1252
    %v1255 = vmul.f32 0.5, %v1254
    %v1256 = vsub.f32 1.5, %v1255
    %v1257 = vmul.f32 %v1252, %v1256
    %vm1258 = vweird.f32 %v792
    %vm1259 = vweird.f32 %v1252
    %vm1260 = vmor %vm1258, %vm1259
    %v1261 = vsel %vm1260, %v1252, %v1257
    %v1262 = vrsqrt.pop %v793
    %v1263 = vmul.f32 %v1262, %v793
    %v1264 = vmul.f32 %v1263, %v1262
    %v1265 = vmul.f32 0.5, %v1264
    %v1266 = vsub.f32 1.5, %v1265
    %v1267 = vmul.f32 %v1262, %v1266
    %vm1268 = vweird.f32 %v793
    %vm1269 = vweird.f32 %v1262
    %vm1270 = vmor %vm1268, %vm1269
    %v1271 = vsel %vm1270, %v1262, %v1267
    %v1272 = vrsqrt.pop %v794
    %v1273 = vmul.f32 %v1272, %v794
    %v1274 = vmul.f32 %v1273, %v1272
    %v1275 = vmul.f32 0.5, %v1274
    %v1276 = vsub.f32 1.5, %v1275
    %v1277 = vmul.f32 %v1272, %v1276
    %vm1278 = vweird.f32 %v794
    %vm1279 = vweird.f32 %v1272
    %vm1280 = vmor %vm1278, %vm1279
    %v1281 = vsel %vm1280, %v1272, %v1277
    %v1282 = vrsqrt.pop %v795
    %v1283 = vmul.f32 %v1282, %v795
    %v1284 = vmul.f32 %v1283, %v1282
    %v1285 = vmul.f32 0.5, %v1284
    %v1286 = vsub.f32 1.5, %v1285
    %v1287 = vmul.f32 %v1282, %v1286
    %vm1288 = vweird.f32 %v795
    %vm1289 = vweird.f32 %v1282
    %vm1290 = vmor %vm1288, %vm1289
    %v1291 = vsel %vm1290, %v1282, %v1287
    %v1292 = vrsqrt.pop %v796
    %v1293 = vmul.f32 %v1292, %v796
    %v1294 = vmul.f32 %v1293, %v1292
    %v1295 = vmul.f32 0.5, %v1294
    %v1296 = vsub.f32 1.5, %v1295
    %v1297 = vmul.f32 %v1292, %v1296
    %vm1298 = vweird.f32 %v796
    %vm1299 = vweird.f32 %v1292
    %vm1300 = vmor %vm1298, %vm1299
    %v1301 = vsel %vm1300, %v1292, %v1297
    %v1302 = vrsqrt.pop %v797
    %v1303 = vmul.f32 %v1302, %v797
    %v1304 = vmul.f32 %v1303, %v1302
    %v1305 = vmul.f32 0.5, %v1304
    %v1306 = vsub.f32 1.5, %v1305
    %v1307 = vmul.f32 %v1302, %v1306
    %vm1308 = vweird.f32 %v797
    %vm1309 = vweird.f32 %v1302
    %vm1310 = vmor %vm1308, %vm1309
    %v1311 = vsel %vm1310, %v1302, %v1307
    %v1312 = vrsqrt.pop %v798
    %v1313 = vmul.f32 %v1312, %v798
    %v1314 = vmul.f32 %v1313, %v1312
    %v1315 = vmul.f32 0.5, %v1314
    %v1316 = vsub.f32 1.5, %v1315
    %v1317 = vmul.f32 %v1312, %v1316
    %vm1318 = vweird.f32 %v798
    %vm1319 = vweird.f32 %v1312
    %vm1320 = vmor %vm1318, %vm1319
    %v1321 = vsel %vm1320, %v1312, %v1317
    %v1322 = vrsqrt.pop %v799
    %v1323 = vmul.f32 %v1322, %v799
    %v1324 = vmul.f32 %v1323, %v1322
    %v1325 = vmul.f32 0.5, %v1324
    %v1326 = vsub.f32 1.5, %v1325
    %v1327 = vmul.f32 %v1322, %v1326
    %vm1328 = vweird.f32 %v799
    %vm1329 = vweird.f32 %v1322
    %vm1330 = vmor %vm1328, %vm1329
    %v1331 = vsel %vm1330, %v1322, %v1327
    %v1332 = vrsqrt.pop %v800
    %v1333 = vmul.f32 %v1332, %v800
    %v1334 = vmul.f32 %v1333, %v1332
    %v1335 = vmul.f32 0.5, %v1334
    %v1336 = vsub.f32 1.5, %v1335
    %v1337 = vmul.f32 %v1332, %v1336
    %vm1338 = vweird.f32 %v800
    %vm1339 = vweird.f32 %v1332
    %vm1340 = vmor %vm1338, %vm1339
    %v1341 = vsel %vm1340, %v1332, %v1337
    %v1342 = vrsqrt.pop %v801
    %v1343 = vmul.f32 %v1342, %v801
    %v1344 = vmul.f32 %v1343, %v1342
    %v1345 = vmul.f32 0.5, %v1344
    %v1346 = vsub.f32 1.5, %v1345
    %v1347 = vmul.f32 %v1342, %v1346
    %vm1348 = vweird.f32 %v801
    %vm1349 = vweird.f32 %v1342
    %vm1350 = vmor %vm1348, %vm1349
    %v1351 = vsel %vm1350, %v1342, %v1347
    %v1352 = vrsqrt.pop %v802
    %v1353 = vmul.f32 %v1352, %v802
    %v1354 = vmul.f32 %v1353, %v1352
    %v1355 = vmul.f32 0.5, %v1354
    %v1356 = vsub.f32 1.5, %v1355
    %v1357 = vmul.f32 %v1352, %v1356
    %vm1358 = vweird.f32 %v802
    %vm1359 = vweird.f32 %v1352
    %vm1360 = vmor %vm1358, %vm1359
    %v1361 = vsel %vm1360, %v1352, %v1357
    %v1362 = vrsqrt.pop %v803
    %v1363 = vmul.f32 %v1362, %v803
    %v1364 = vmul.f32 %v1363, %v1362
    %v1365 = vmul.f32 0.5, %v1364
    %v1366 = vsub.f32 1.5, %v1365
    %v1367 = vmul.f32 %v1362, %v1366
    %vm1368 = vweird.f32 %v803
    %vm1369 = vweird.f32 %v1362
    %vm1370 = vmor %vm1368, %vm1369
    %v1371 = vsel %vm1370, %v1362, %v1367
    %v1372 = vrsqrt.pop %v804
    %v1373 = vmul.f32 %v1372, %v804
    %v1374 = vmul.f32 %v1373, %v1372
    %v1375 = vmul.f32 0.5, %v1374
    %v1376 = vsub.f32 1.5, %v1375
    %v1377 = vmul.f32 %v1372, %v1376
    %vm1378 = vweird.f32 %v804
    %vm1379 = vweird.f32 %v1372
    %vm1380 = vmor %vm1378, %vm1379
    %v1381 = vsel %vm1380, %v1372, %v1377
    %v1382 = vrsqrt.pop %v805
    %v1383 = vmul.f32 %v1382, %v805
    %v1384 = vmul.f32 %v1383, %v1382
    %v1385 = vmul.f32 0.5, %v1384
    %v1386 = vsub.f32 1.5, %v1385
    %v1387 = vmul.f32 %v1382, %v1386
    %vm1388 = vweird.f32 %v805
    %vm1389 = vweird.f32 %v1382
    %vm1390 = vmor %vm1388, %vm1389
    %v1391 = vsel %vm1390, %v1382, %v1387
    %v1392 = vrsqrt.pop %v806
    %v1393 = vmul.f32 %v1392, %v806
    %v1394 = vmul.f32 %v1393, %v1392
    %v1395 = vmul.f32 0.5, %v1394
    %v1396 = vsub.f32 1.5, %v1395
    %v1397 = vmul.f32 %v1392, %v1396
    %vm1398 = vweird.f32 %v806
    %vm1399 = vweird.f32 %v1392
    %vm1400 = vmor %vm1398, %vm1399
    %v1401 = vsel %vm1400, %v1392, %v1397
    %v1402 = vrsqrt.pop %v807
    %v1403 = vmul.f32 %v1402, %v807
    %v1404 = vmul.f32 %v1403, %v1402
    %v1405 = vmul.f32 0.5, %v1404
    %v1406 = vsub.f32 1.5, %v1405
    %v1407 = vmul.f32 %v1402, %v1406
    %vm1408 = vweird.f32 %v807
    %vm1409 = vweird.f32 %v1402
    %vm1410 = vmor %vm1408, %vm1409
    %v1411 = vsel %vm1410, %v1402, %v1407
    %v1412 = vrsqrt.pop %v808
    %v1413 = vmul.f32 %v1412, %v808
    %v1414 = vmul.f32 %v1413, %v1412
    %v1415 = vmul.f32 0.5, %v1414
    %v1416 = vsub.f32 1.5, %v1415
    %v1417 = vmul.f32 %v1412, %v1416
    %vm1418 = vweird.f32 %v808
    %vm1419 = vweird.f32 %v1412
    %vm1420 = vmor %vm1418, %vm1419
    %v1421 = vsel %vm1420, %v1412, %v1417
    %v1422 = vrsqrt.pop %v809
    %v1423 = vmul.f32 %v1422, %v809
    %v1424 = vmul.f32 %v1423, %v1422
    %v1425 = vmul.f32 0.5, %v1424
    %v1426 = vsub.f32 1.5, %v1425
    %v1427 = vmul.f32 %v1422, %v1426
    %vm1428 = vweird.f32 %v809
    %vm1429 = vweird.f32 %v1422
    %vm1430 = vmor %vm1428, %vm1429
    %v1431 = vsel %vm1430, %v1422, %v1427
    %v1432 = vrsqrt.pop %v810
    %v1433 = vmul.f32 %v1432, %v810
    %v1434 = vmul.f32 %v1433, %v1432
    %v1435 = vmul.f32 0.5, %v1434
    %v1436 = vsub.f32 1.5, %v1435
    %v1437 = vmul.f32 %v1432, %v1436
    %vm1438 = vweird.f32 %v810
    %vm1439 = vweird.f32 %v1432
    %vm1440 = vmor %vm1438, %vm1439
    %v1441 = vsel %vm1440, %v1432, %v1437
    %v1442 = vrsqrt.pop %v811
    %v1443 = vmul.f32 %v1442, %v811
    %v1444 = vmul.f32 %v1443, %v1442
    %v1445 = vmul.f32 0.5, %v1444
    %v1446 = vsub.f32 1.5, %v1445
    %v1447 = vmul.f32 %v1442, %v1446
    %vm1448 = vweird.f32 %v811
    %vm1449 = vweird.f32 %v1442
    %vm1450 = vmor %vm1448, %vm1449
    %v1451 = vsel %vm1450, %v1442, %v1447
    %v1452 = vmul.f32 %v492, %v821
    %v1453 = vmul.f32 %v493, %v831
    %v1454 = vmul.f32 %v494, %v841
    %v1455 = vmul.f32 %v495, %v851
    %v1456 = vmul.f32 %v496, %v861
    %v1457 = vmul.f32 %v497, %v871
    %v1458 = vmul.f32 %v498, %v881
    %v1459 = vmul.f32 %v499, %v891
    %v1460 = vmul.f32 %v500, %v901
    %v1461 = vmul.f32 %v501, %v911
    %v1462 = vmul.f32 %v502, %v921
    %v1463 = vmul.f32 %v503, %v931
    %v1464 = vmul.f32 %v504, %v941
    %v1465 = vmul.f32 %v505, %v951
    %v1466 = vmul.f32 %v506, %v961
    %v1467 = vmul.f32 %v507, %v971
    %v1468 = vmul.f32 %v508, %v981
    %v1469 = vmul.f32 %v509, %v991
    %v1470 = vmul.f32 %v510, %v1001
    %v1471 = vmul.f32 %v511, %v1011
    %v1472 = vmul.f32 %v512, %v1021
    %v1473 = vmul.f32 %v513, %v1031
    %v1474 = vmul.f32 %v514, %v1041
    %v1475 = vmul.f32 %v515, %v1051
    %v1476 = vmul.f32 %v516, %v1061
    %v1477 = vmul.f32 %v517, %v1071
    %v1478 = vmul.f32 %v518, %v1081
    %v1479 = vmul.f32 %v519, %v1091
    %v1480 = vmul.f32 %v520, %v1101
    %v1481 = vmul.f32 %v521, %v1111
    %v1482 = vmul.f32 %v522, %v1121
    %v1483 = vmul.f32 %v523, %v1131
    %v1484 = vmul.f32 %v524, %v1141
    %v1485 = vmul.f32 %v525, %v1151
    %v1486 = vmul.f32 %v526, %v1161
    %v1487 = vmul.f32 %v527, %v1171
    %v1488 = vmul.f32 %v528, %v1181
    %v1489 = vmul.f32 %v529, %v1191
    %v1490 = vmul.f32 %v530, %v1201
    %v1491 = vmul.f32 %v531, %v1211
    %v1492 = vmul.f32 %v532, %v1221
    %v1493 = vmul.f32 %v533, %v1231
    %v1494 = vmul.f32 %v534, %v1241
    %v1495 = vmul.f32 %v535, %v1251
    %v1496 = vmul.f32 %v536, %v1261
    %v1497 = vmul.f32 %v537, %v1271
    %v1498 = vmul.f32 %v538, %v1281
    %v1499 = vmul.f32 %v539, %v1291
    %v1500 = vmul.f32 %v540, %v1301
    %v1501 = vmul.f32 %v541, %v1311
    %v1502 = vmul.f32 %v542, %v1321
    %v1503 = vmul.f32 %v543, %v1331
    %v1504 = vmul.f32 %v544, %v1341
    %v1505 = vmul.f32 %v545, %v1351
    %v1506 = vmul.f32 %v546, %v1361
    %v1507 = vmul.f32 %v547, %v1371
    %v1508 = vmul.f32 %v548, %v1381
    %v1509 = vmul.f32 %v549, %v1391
    %v1510 = vmul.f32 %v550, %v1401
    %v1511 = vmul.f32 %v551, %v1411
    %v1512 = vmul.f32 %v552, %v1421
    %v1513 = vmul.f32 %v553, %v1431
    %v1514 = vmul.f32 %v554, %v1441
    %v1515 = vmul.f32 %v555, %v1451
    %v1516 = vmax.f32 %v1452, 1e-06
    %v1517 = vmax.f32 %v1453, 1e-06
    %v1518 = vmax.f32 %v1454, 1e-06
    %v1519 = vmax.f32 %v1455, 1e-06
    %v1520 = vmax.f32 %v1456, 1e-06
    %v1521 = vmax.f32 %v1457, 1e-06
    %v1522 = vmax.f32 %v1458, 1e-06
    %v1523 = vmax.f32 %v1459, 1e-06
    %v1524 = vmax.f32 %v1460, 1e-06
    %v1525 = vmax.f32 %v1461, 1e-06
    %v1526 = vmax.f32 %v1462, 1e-06
    %v1527 = vmax.f32 %v1463, 1e-06
    %v1528 = vmax.f32 %v1464, 1e-06
    %v1529 = vmax.f32 %v1465, 1e-06
    %v1530 = vmax.f32 %v1466, 1e-06
    %v1531 = vmax.f32 %v1467, 1e-06
    %v1532 = vmax.f32 %v1468, 1e-06
    %v1533 = vmax.f32 %v1469, 1e-06
    %v1534 = vmax.f32 %v1470, 1e-06
    %v1535 = vmax.f32 %v1471, 1e-06
    %v1536 = vmax.f32 %v1472, 1e-06
    %v1537 = vmax.f32 %v1473, 1e-06
    %v1538 = vmax.f32 %v1474, 1e-06
    %v1539 = vmax.f32 %v1475, 1e-06
    %v1540 = vmax.f32 %v1476, 1e-06
    %v1541 = vmax.f32 %v1477, 1e-06
    %v1542 = vmax.f32 %v1478, 1e-06
    %v1543 = vmax.f32 %v1479, 1e-06
    %v1544 = vmax.f32 %v1480, 1e-06
    %v1545 = vmax.f32 %v1481, 1e-06
    %v1546 = vmax.f32 %v1482, 1e-06
    %v1547 = vmax.f32 %v1483, 1e-06
    %v1548 = vmax.f32 %v1484, 1e-06
    %v1549 = vmax.f32 %v1485, 1e-06
    %v1550 = vmax.f32 %v1486, 1e-06
    %v1551 = vmax.f32 %v1487, 1e-06
    %v1552 = vmax.f32 %v1488, 1e-06
    %v1553 = vmax.f32 %v1489, 1e-06
    %v1554 = vmax.f32 %v1490, 1e-06
    %v1555 = vmax.f32 %v1491, 1e-06
    %v1556 = vmax.f32 %v1492, 1e-06
    %v1557 = vmax.f32 %v1493, 1e-06
    %v1558 = vmax.f32 %v1494, 1e-06
    %v1559 = vmax.f32 %v1495, 1e-06
    %v1560 = vmax.f32 %v1496, 1e-06
    %v1561 = vmax.f32 %v1497, 1e-06
    %v1562 = vmax.f32 %v1498, 1e-06
    %v1563 = vmax.f32 %v1499, 1e-06
    %v1564 = vmax.f32 %v1500, 1e-06
    %v1565 = vmax.f32 %v1501, 1e-06
    %v1566 = vmax.f32 %v1502, 1e-06
    %v1567 = vmax.f32 %v1503, 1e-06
    %v1568 = vmax.f32 %v1504, 1e-06
    %v1569 = vmax.f32 %v1505, 1e-06
    %v1570 = vmax.f32 %v1506, 1e-06
    %v1571 = vmax.f32 %v1507, 1e-06
    %v1572 = vmax.f32 %v1508, 1e-06
    %v1573 = vmax.f32 %v1509, 1e-06
    %v1574 = vmax.f32 %v1510, 1e-06
    %v1575 = vmax.f32 %v1511, 1e-06
    %v1576 = vmax.f32 %v1512, 1e-06
    %v1577 = vmax.f32 %v1513, 1e-06
    %v1578 = vmax.f32 %v1514, 1e-06
    %v1579 = vmax.f32 %v1515, 1e-06
    %v1580 = vmul.f32 %v1516, %v1516
    %v1581 = vmul.f32 %v1517, %v1517
    %v1582 = vmul.f32 %v1518, %v1518
    %v1583 = vmul.f32 %v1519, %v1519
    %v1584 = vmul.f32 %v1520, %v1520
    %v1585 = vmul.f32 %v1521, %v1521
    %v1586 = vmul.f32 %v1522, %v1522
    %v1587 = vmul.f32 %v1523, %v1523
    %v1588 = vmul.f32 %v1524, %v1524
    %v1589 = vmul.f32 %v1525, %v1525
    %v1590 = vmul.f32 %v1526, %v1526
    %v1591 = vmul.f32 %v1527, %v1527
    %v1592 = vmul.f32 %v1528, %v1528
    %v1593 = vmul.f32 %v1529, %v1529
    %v1594 = vmul.f32 %v1530, %v1530
    %v1595 = vmul.f32 %v1531, %v1531
    %v1596 = vmul.f32 %v1532, %v1532
    %v1597 = vmul.f32 %v1533, %v1533
    %v1598 = vmul.f32 %v1534, %v1534
    %v1599 = vmul.f32 %v1535, %v1535
    %v1600 = vmul.f32 %v1536, %v1536
    %v1601 = vmul.f32 %v1537, %v1537
    %v1602 = vmul.f32 %v1538, %v1538
    %v1603 = vmul.f32 %v1539, %v1539
    %v1604 = vmul.f32 %v1540, %v1540
    %v1605 = vmul.f32 %v1541, %v1541
    %v1606 = vmul.f32 %v1542, %v1542
    %v1607 = vmul.f32 %v1543, %v1543
    %v1608 = vmul.f32 %v1544, %v1544
    %v1609 = vmul.f32 %v1545, %v1545
    %v1610 = vmul.f32 %v1546, %v1546
    %v1611 = vmul.f32 %v1547, %v1547
    %v1612 = vmul.f32 %v1548, %v1548
    %v1613 = vmul.f32 %v1549, %v1549
    %v1614 = vmul.f32 %v1550, %v1550
    %v1615 = vmul.f32 %v1551, %v1551
    %v1616 = vmul.f32 %v1552, %v1552
    %v1617 = vmul.f32 %v1553, %v1553
    %v1618 = vmul.f32 %v1554, %v1554
    %v1619 = vmul.f32 %v1555, %v1555
    %v1620 = vmul.f32 %v1556, %v1556
    %v1621 = vmul.f32 %v1557, %v1557
    %v1622 = vmul.f32 %v1558, %v1558
    %v1623 = vmul.f32 %v1559, %v1559
    %v1624 = vmul.f32 %v1560, %v1560
    %v1625 = vmul.f32 %v1561, %v1561
    %v1626 = vmul.f32 %v1562, %v1562
    %v1627 = vmul.f32 %v1563, %v1563
    %v1628 = vmul.f32 %v1564, %v1564
    %v1629 = vmul.f32 %v1565, %v1565
    %v1630 = vmul.f32 %v1566, %v1566
    %v1631 = vmul.f32 %v1567, %v1567
    %v1632 = vmul.f32 %v1568, %v1568
    %v1633 = vmul.f32 %v1569, %v1569
    %v1634 = vmul.f32 %v1570, %v1570
    %v1635 = vmul.f32 %v1571, %v1571
    %v1636 = vmul.f32 %v1572, %v1572
    %v1637 = vmul.f32 %v1573, %v1573
    %v1638 = vmul.f32 %v1574, %v1574
    %v1639 = vmul.f32 %v1575, %v1575
    %v1640 = vmul.f32 %v1576, %v1576
    %v1641 = vmul.f32 %v1577, %v1577
    %v1642 = vmul.f32 %v1578, %v1578
    %v1643 = vmul.f32 %v1579, %v1579
    %v1644 = vmul.f32 %v1580, %v1516
    %v1645 = vmul.f32 %v1581, %v1517
    %v1646 = vmul.f32 %v1582, %v1518
    %v1647 = vmul.f32 %v1583, %v1519
    %v1648 = vmul.f32 %v1584, %v1520
    %v1649 = vmul.f32 %v1585, %v1521
    %v1650 = vmul.f32 %v1586, %v1522
    %v1651 = vmul.f32 %v1587, %v1523
    %v1652 = vmul.f32 %v1588, %v1524
    %v1653 = vmul.f32 %v1589, %v1525
    %v1654 = vmul.f32 %v1590, %v1526
    %v1655 = vmul.f32 %v1591, %v1527
    %v1656 = vmul.f32 %v1592, %v1528
    %v1657 = vmul.f32 %v1593, %v1529
    %v1658 = vmul.f32 %v1594, %v1530
    %v1659 = vmul.f32 %v1595, %v1531
    %v1660 = vmul.f32 %v1596, %v1532
    %v1661 = vmul.f32 %v1597, %v1533
    %v1662 = vmul.f32 %v1598, %v1534
    %v1663 = vmul.f32 %v1599, %v1535
    %v1664 = vmul.f32 %v1600, %v1536
    %v1665 = vmul.f32 %v1601, %v1537
    %v1666 = vmul.f32 %v1602, %v1538
    %v1667 = vmul.f32 %v1603, %v1539
    %v1668 = vmul.f32 %v1604, %v1540
    %v1669 = vmul.f32 %v1605, %v1541
    %v1670 = vmul.f32 %v1606, %v1542
    %v1671 = vmul.f32 %v1607, %v1543
    %v1672 = vmul.f32 %v1608, %v1544
    %v1673 = vmul.f32 %v1609, %v1545
    %v1674 = vmul.f32 %v1610, %v1546
    %v1675 = vmul.f32 %v1611, %v1547
    %v1676 = vmul.f32 %v1612, %v1548
    %v1677 = vmul.f32 %v1613, %v1549
    %v1678 = vmul.f32 %v1614, %v1550
    %v1679 = vmul.f32 %v1615, %v1551
    %v1680 = vmul.f32 %v1616, %v1552
    %v1681 = vmul.f32 %v1617, %v1553
    %v1682 = vmul.f32 %v1618, %v1554
    %v1683 = vmul.f32 %v1619, %v1555
    %v1684 = vmul.f32 %v1620, %v1556
    %v1685 = vmul.f32 %v1621, %v1557
    %v1686 = vmul.f32 %v1622, %v1558
    %v1687 = vmul.f32 %v1623, %v1559
    %v1688 = vmul.f32 %v1624, %v1560
    %v1689 = vmul.f32 %v1625, %v1561
    %v1690 = vmul.f32 %v1626, %v1562
    %v1691 = vmul.f32 %v1627, %v1563
    %v1692 = vmul.f32 %v1628, %v1564
    %v1693 = vmul.f32 %v1629, %v1565
    %v1694 = vmul.f32 %v1630, %v1566
    %v1695 = vmul.f32 %v1631, %v1567
    %v1696 = vmul.f32 %v1632, %v1568
    %v1697 = vmul.f32 %v1633, %v1569
    %v1698 = vmul.f32 %v1634, %v1570
    %v1699 = vmul.f32 %v1635, %v1571
    %v1700 = vmul.f32 %v1636, %v1572
    %v1701 = vmul.f32 %v1637, %v1573
    %v1702 = vmul.f32 %v1638, %v1574
    %v1703 = vmul.f32 %v1639, %v1575
    %v1704 = vmul.f32 %v1640, %v1576
    %v1705 = vmul.f32 %v1641, %v1577
    %v1706 = vmul.f32 %v1642, %v1578
    %v1707 = vmul.f32 %v1643, %v1579
    %v1708 = vadd.f32 %v1644, %v1645
    %v1709 = vadd.f32 %v1708, %v1646
    %v1710 = vadd.f32 %v1709, %v1647
    %v1711 = vadd.f32 %v1710, %v1648
    %v1712 = vadd.f32 %v1711, %v1649
    %v1713 = vadd.f32 %v1712, %v1650
    %v1714 = vadd.f32 %v1713, %v1651
    %v1715 = vadd.f32 %v1714, %v1652
    %v1716 = vadd.f32 %v1715, %v1653
    %v1717 = vadd.f32 %v1716, %v1654
    %v1718 = vadd.f32 %v1717, %v1655
    %v1719 = vadd.f32 %v1718, %v1656
    %v1720 = vadd.f32 %v1719, %v1657
    %v1721 = vadd.f32 %v1720, %v1658
    %v1722 = vadd.f32 %v1721, %v1659
    %v1723 = vadd.f32 %v1722, %v1660
    %v1724 = vadd.f32 %v1723, %v1661
    %v1725 = vadd.f32 %v1724, %v1662
    %v1726 = vadd.f32 %v1725, %v1663
    %v1727 = vadd.f32 %v1726, %v1664
    %v1728 = vadd.f32 %v1727, %v1665
    %v1729 = vadd.f32 %v1728, %v1666
    %v1730 = vadd.f32 %v1729, %v1667
    %v1731 = vadd.f32 %v1730, %v1668
    %v1732 = vadd.f32 %v1731, %v1669
    %v1733 = vadd.f32 %v1732, %v1670
    %v1734 = vadd.f32 %v1733, %v1671
    %v1735 = vadd.f32 %v1734, %v1672
    %v1736 = vadd.f32 %v1735, %v1673
    %v1737 = vadd.f32 %v1736, %v1674
    %v1738 = vadd.f32 %v1737, %v1675
    %v1739 = vrot.slane %v1738, 4
    %v1740 = vadd.f32 %v1738, %v1739
    %v1741 = vrot.slane %v1740, 2
    %v1742 = vadd.f32 %v1740, %v1741
    %v1743 = vrot.slane %v1742, 1
    %v1744 = vadd.f32 %v1742, %v1743
    %v1745 = vadd.f32 %v1676, %v1677
    %v1746 = vadd.f32 %v1745, %v1678
    %v1747 = vadd.f32 %v1746, %v1679
    %v1748 = vadd.f32 %v1747, %v1680
    %v1749 = vadd.f32 %v1748, %v1681
    %v1750 = vadd.f32 %v1749, %v1682
    %v1751 = vadd.f32 %v1750, %v1683
    %v1752 = vadd.f32 %v1751, %v1684
    %v1753 = vadd.f32 %v1752, %v1685
    %v1754 = vadd.f32 %v1753, %v1686
    %v1755 = vadd.f32 %v1754, %v1687
    %v1756 = vadd.f32 %v1755, %v1688
    %v1757 = vadd.f32 %v1756, %v1689
    %v1758 = vadd.f32 %v1757, %v1690
    %v1759 = vadd.f32 %v1758, %v1691
    %v1760 = vadd.f32 %v1759, %v1692
    %v1761 = vadd.f32 %v1760, %v1693
    %v1762 = vadd.f32 %v1761, %v1694
    %v1763 = vadd.f32 %v1762, %v1695
    %v1764 = vadd.f32 %v1763, %v1696
    %v1765 = vadd.f32 %v1764, %v1697
    %v1766 = vadd.f32 %v1765, %v1698
    %v1767 = vadd.f32 %v1766, %v1699
    %v1768 = vadd.f32 %v1767, %v1700
    %v1769 = vadd.f32 %v1768, %v1701
    %v1770 = vadd.f32 %v1769, %v1702
    %v1771 = vadd.f32 %v1770, %v1703
    %v1772 = vadd.f32 %v1771, %v1704
    %v1773 = vadd.f32 %v1772, %v1705
    %v1774 = vadd.f32 %v1773, %v1706
    %v1775 = vadd.f32 %v1774, %v1707
    %v1776 = vrot.slane %v1775, 4
    %v1777 = vadd.f32 %v1775, %v1776
    %v1778 = vrot.slane %v1777, 2
    %v1779 = vadd.f32 %v1777, %v1778
    %v1780 = vrot.slane %v1779, 1
    %v1781 = vadd.f32 %v1779, %v1780
    %v1782 = vrcp.pop 256.0
    %v1783 = vmul.f32 256.0, %v1782
    %v1784 = vsub.f32 1.0, %v1783
    %v1785 = vmul.f32 %v1782, %v1784
    %v1786 = vadd.f32 %v1782, %v1785
    %vm1787 = vweird.f32 %v1782
    %v1788 = vsel %vm1787, %v1782, %v1786
    %v1789 = vmul.f32 %v1744, %v1788
    %v1790 = vmul.f32 %v1781, %v1788
    %v1791 = vpow.f32 %v1789, 0.33333334
    %v1792 = vpow.f32 %v1790, 0.33333334
    %v1793 = vld [vmem:[%s3] sm:$0xff]
    %v1794 = vld [vmem:[%s3 + $0x8] sm:$0xff]
    %v1795 = vld [vmem:[%s3 + $0x10] sm:$0xff]
    %v1796 = vld [vmem:[%s3 + $0x18] sm:$0xff]
    %v1797 = vld [vmem:[%s3 + $0x20] sm:$0xff]
    %v1798 = vld [vmem:[%s3 + $0x28] sm:$0xff]
    %v1799 = vld [vmem:[%s3 + $0x30] sm:$0xff]
    %v1800 = vld [vmem:[%s3 + $0x38] sm:$0xff]
    %v1801 = vld [vmem:[%s3 + $0x40] sm:$0xff]
    %v1802 = vld [vmem:[%s3 + $0x48] sm:$0xff]
    %v1803 = vld [vmem:[%s3 + $0x50] sm:$0xff]
    %v1804 = vld [vmem:[%s3 + $0x58] sm:$0xff]
    %v1805 = vld [vmem:[%s3 + $0x60] sm:$0xff]
    %v1806 = vld [vmem:[%s3 + $0x68] sm:$0xff]
    %v1807 = vld [vmem:[%s3 + $0x70] sm:$0xff]
    %v1808 = vld [vmem:[%s3 + $0x78] sm:$0xff]
    %v1809 = vld [vmem:[%s4] sm:$0x1]
    %v1811 = vperm.slane %v1809, 0
    %vm1815 = vcmask 1041409
    %v1816 = vsel %vm1815, %v1792, %v1791
    %1818 = vmatpush.msra.mxu0 %v1808
    %1819 = vmatpush.msra.mxu0 %v1807
    %1820 = vmatpush.msra.mxu0 %v1806
    %1821 = vmatpush.msra.mxu0 %v1805
    %1822 = vmatpush.msra.mxu0 %v1804
    %1823 = vmatpush.msra.mxu0 %v1803
    %1824 = vmatpush.msra.mxu0 %v1802
    %1825 = vmatpush.msra.mxu0 %v1801
    %1826 = vmatpush.msra.mxu0 %v1800
    %1827 = vmatpush.msra.mxu0 %v1799
    %1828 = vmatpush.msra.mxu0 %v1798
    %1829 = vmatpush.msra.mxu0 %v1797
    %1830 = vmatpush.msra.mxu0 %v1796
    %1831 = vmatpush.msra.mxu0 %v1795
    %1832 = vmatpush.msra.mxu0 %v1794
    %1833 = vmatpush.msra.mxu0 %v1793
    %1834 = vmatmul.f32.gmra.mxu0 %v1816
    %v1835 = vpop.f32.mrf.mxu0
    %v1836 = vadd.f32 %v1811, %v1835
    %1837 = vdwg.mxu0
    %v1838 = vmul.f32 %v1836, %v1836
    %vm1839 = vcmask 1041408
    %v1840 = vsel %vm1839, %v1838, 0.0
    %1841 = vadd.xlane.f32.xlu0 %v1840
    %v1842 = vpop.xlane.xlu0 %1841
    %v1843 = vmax.f32 %v1842, 1e-24
    %v1844 = vrsqrt.pop %v1843
    %v1845 = vmul.f32 %v1844, %v1843
    %v1846 = vmul.f32 %v1845, %v1844
    %v1847 = vmul.f32 0.5, %v1846
    %v1848 = vsub.f32 1.5, %v1847
    %v1849 = vmul.f32 %v1844, %v1848
    %vm1850 = vweird.f32 %v1843
    %vm1851 = vweird.f32 %v1844
    %vm1852 = vmor %vm1850, %vm1851
    %v1853 = vsel %vm1852, %v1844, %v1849
    %v1854 = vmul.f32 %v1836, %v1853
    %1855 = vst [vmem:[#allocation2] sm:$0x3] %v1854
    // Predicated region
    $region22: #{geolocalization_forward.1} parent=1 // pred_check
      _
    $region23: #{geolocalization_forward.1} parent=1 // pred_check_branch
      %1857 = sbr.rel (0) target = $region25
    $region24: #{geolocalization_forward.1} parent=1 // pred_region
      %1859 = vsyncadd [#allocation3], 0
      %s1861 = sshll.u32 [#allocation2], 4
      %s1862 = int_to_ptr.vmem [resolvable:$true] %s1861
      %s1863 = sshll.u32 %s5, 4
      %s1864 = int_to_ptr.hbm [resolvable:$true] %s1863
      %1866 = dma.vmem_to_hbm [thread:$0]  %s1862, 32, %s1864, [#allocation3]
    $region25: #{geolocalization_forward.1} parent=1 // pred_fallthru
      _
    // Predicated region
    $region26: #{geolocalization_forward.1} parent=1 // pred_check
      _
    $region27: #{geolocalization_forward.1} parent=1 // pred_check_branch
      %1868 = sbr.rel (0) target = $region29
    $region28: #{geolocalization_forward.1} parent=1 // pred_region
      %1870 = dma.done [#allocation3], 32
    $region29: #{geolocalization_forward.1} parent=1 // pred_fallthru
      _
    %1871 = vsyncpa [#allocation3], 1

</llo_original>
